<compile_context>
chip_gen: v7x
topology: tpu7x:2x2x1
jax: 0.10.0
libtpu: 0.0.40
codegen_flags: <defaults>
</compile_context>

<pallas_src>
import functools

import jax
import jax.numpy as jnp
from jax.experimental import pallas as pl
from jax.experimental.pallas import tpu as pltpu

EPS = 1e-5
_VMEM_LIMIT = 48 * 1024 * 1024      # safe on v7x (64 MiB physical) and generous on v5e/v6e
_BLOCK_BUDGET = 6 * 1024 * 1024     # target per-grid-step working set (headroom for dbl-buffering)


# ---------------- in-kernel helpers ----------------

def _lif_unrolled(xs, inv_tau, threshold, spike_dtype=jnp.bfloat16):
    """LIF over the (static, unrolled) time axis.

    xs: list of T f32 arrays.  Membrane math is f32; spikes (exact 0/1) are
    emitted directly in `spike_dtype` so they can feed the MXU without a
    second cast.
    """
    mem = jnp.zeros_like(xs[0])
    spikes = []
    for x_t in xs:
        mem = mem + (x_t - mem) * inv_tau            # charge: 1/tau as a constant multiply
        fired = mem >= threshold                     # heaviside(mem - thr)
        spikes.append(fired.astype(spike_dtype))
        mem = jnp.where(fired, 0.0, mem)             # hard reset
    return spikes


# ---------------- Pallas kernels ----------------

def _ssa_kernel(x_ref, wqkv_ref, oqkv_ref, wproj_ref, oproj_ref, out_ref,
                *, seq_n, num_heads, attn_scale, inv_tau, threshold):
    """Fused SSA: proj_lif -> qkv conv+BN -> q/k/v LIF -> attention
    -> attn_lif(0.5) -> proj conv+BN -> +residual.   Block = (T, nb*seq_n, C)."""
    T, rows, C = x_ref.shape
    nb = rows // seq_n
    D = C // num_heads
    Z = T * nb                                        # single batch dim for attention einsums

    # 1) proj_lif on the raw input (spikes in bf16)
    in_spikes = _lif_unrolled([x_ref[t] for t in range(T)], inv_tau, threshold)
    sp = jnp.concatenate(in_spikes, axis=0)                                 # (T*rows, C) bf16

    # 2) fused q/k/v 1x1 conv (+BN scale folded into weights) -> offset add
    qkv = jnp.dot(sp, wqkv_ref[...], preferred_element_type=jnp.float32)   # (T*rows, 3C) f32
    qkv = qkv + oqkv_ref[...]

    # 3) q/k/v LIFs share tau/threshold -> one LIF across the fused 3C channels
    qkv_sp = _lif_unrolled([qkv[t * rows:(t + 1) * rows] for t in range(T)],
                           inv_tau, threshold)
    qkv_sp = jnp.concatenate(qkv_sp, axis=0)                                # (T*rows, 3C) bf16
    qkv_sp = qkv_sp.reshape(Z, seq_n, 3 * C)          # rows are batch-major -> (T*nb, N, 3C)
    q = qkv_sp[:, :, 0:C]
    k = qkv_sp[:, :, C:2 * C]
    v = qkv_sp[:, :, 2 * C:3 * C]

    # 4) spiking self-attention, batched over Z = T*nb (one einsum pair per head;
    #    heads stay as contiguous lane slices since channels are head-interleaved)
    head_out = []
    for h in range(num_heads):
        sl = slice(h * D, (h + 1) * D)
        sc = jnp.einsum('znd,zmd->znm', q[:, :, sl], k[:, :, sl],
                        preferred_element_type=jnp.float32)                # coincidence counts
        # counts <= D are exactly representable in bf16 -> bf16 MXU matmul is bit-exact
        head_out.append(jnp.einsum('znm,zmd->znd',
                                   sc.astype(jnp.bfloat16), v[:, :, sl],
                                   preferred_element_type=jnp.float32))    # (Z, N, D)
    attn = jnp.concatenate(head_out, axis=-1) * attn_scale                 # (Z, N, C) f32
    attn = attn.reshape(T * rows, C)

    # 5) attn_lif (threshold 0.5) -> proj conv (+BN folded) -> residual add
    attn_sp = _lif_unrolled([attn[t * rows:(t + 1) * rows] for t in range(T)],
                            inv_tau, 0.5)
    asp = jnp.concatenate(attn_sp, axis=0)                                  # (T*rows, C) bf16
    y = jnp.dot(asp, wproj_ref[...], preferred_element_type=jnp.float32)
    y = y + oproj_ref[...]
    for t in range(T):
        out_ref[t] = x_ref[t] + y[t * rows:(t + 1) * rows]


def _mlp_kernel(x_ref, w1_ref, o1_ref, w2_ref, o2_ref, out_ref,
                *, inv_tau, threshold):
    """fc1_lif -> fc1 conv+BN -> fc2_lif -> fc2 conv+BN -> +residual."""
    T, tm, C = x_ref.shape
    spikes1 = _lif_unrolled([x_ref[t] for t in range(T)], inv_tau, threshold)
    sp1 = jnp.concatenate(spikes1, axis=0)                                  # (T*tm, C) bf16
    h = jnp.dot(sp1, w1_ref[...], preferred_element_type=jnp.float32)      # (T*tm, hidden)
    h = h + o1_ref[...]
    spikes2 = _lif_unrolled([h[t * tm:(t + 1) * tm] for t in range(T)],
                            inv_tau, threshold)
    sp2 = jnp.concatenate(spikes2, axis=0)
    y = jnp.dot(sp2, w2_ref[...], preferred_element_type=jnp.float32)      # (T*tm, C)
    y = y + o2_ref[...]
    for t in range(T):
        out_ref[t] = x_ref[t] + y[t * tm:(t + 1) * tm]


# ---------------- tile pickers & pallas_call wrappers ----------------

def _divisors_desc(n):
    return [d for d in range(n, 0, -1) if n % d == 0]


def _pick_tile_b(batch, seq_n, step, channels, num_heads):
    """Batches per SSA grid step: divisor of `batch`, VMEM-budgeted, and keeping
    >= 2 grid steps when possible so both v7x TensorCores get work."""
    # rough per-batch working-set bytes: f32 in/out/qkv/attn + bf16 spikes + f32 scores
    per_b = step * seq_n * (channels * (4 + 4 + 2 + 2 + 4)
                            + 3 * channels * (4 + 2)
                            + num_heads * seq_n * 4)
    cap = max(1, _BLOCK_BUDGET // max(per_b, 1))
    if batch >= 2:
        cap = min(cap, batch // 2)
    for d in _divisors_desc(batch):
        if d <= cap:
            return d
    return 1


def _pick_tile_m(m, step, channels, hidden):
    """Rows per MLP grid step: divisor of m, multiple of 8 (prefer 128, then 16),
    VMEM-budgeted, keeping >= 2 grid steps when possible."""
    per_row = step * (channels * (4 + 4 + 2) + hidden * (4 + 2))
    cap = max(8, _BLOCK_BUDGET // max(per_row, 1))
    if m >= 16:
        cap = min(cap, m // 2)
    cands = [d for d in _divisors_desc(m) if d <= cap and d % 8 == 0]
    if not cands:
        return m                                     # single full block fallback

    def rank(d):
        return (d % 128 == 0, d % 16 == 0, d)

    return max(cands, key=rank)


def _compiler_params():
    return pltpu.CompilerParams(dimension_semantics=("parallel",),
                                vmem_limit_bytes=_VMEM_LIMIT)


def ssa_block(x, w_qkv, o_qkv, w_proj, o_proj, *, seq_n, num_heads, attn_scale,
              tau, threshold):
    T, M, C = x.shape
    assert M % seq_n == 0, "M must be batch-major multiples of seq_n"
    assert C % num_heads == 0, "embed_dim must be divisible by num_heads"
    B = M // seq_n
    tile_b = _pick_tile_b(B, seq_n, T, C, num_heads)
    assert B % tile_b == 0
    if tile_b > 1:
        assert seq_n % 8 == 0, "seq_n must be a multiple of 8 to pack batches per block"
    rows = tile_b * seq_n
    assert rows % 8 == 0 or rows == M, "block rows must be sublane-aligned"

    blk = pl.BlockSpec((T, rows, C), lambda i: (0, i, 0))
    return pl.pallas_call(
        functools.partial(_ssa_kernel, seq_n=seq_n, num_heads=num_heads,
                          attn_scale=attn_scale, inv_tau=1.0 / tau,
                          threshold=threshold),
        grid=(B // tile_b,),
        in_specs=[blk,
                  pl.BlockSpec((C, 3 * C), lambda i: (0, 0)),
                  pl.BlockSpec((1, 3 * C), lambda i: (0, 0)),
                  pl.BlockSpec((C, C), lambda i: (0, 0)),
                  pl.BlockSpec((1, C), lambda i: (0, 0))],
        out_specs=blk,
        out_shape=jax.ShapeDtypeStruct((T, M, C), jnp.float32),
        compiler_params=_compiler_params(),
    )(x, w_qkv, o_qkv, w_proj, o_proj)


def mlp_block(x, w1, o1, w2, o2, *, tau, threshold):
    T, M, C = x.shape
    hidden = w1.shape[1]
    tile_m = _pick_tile_m(M, T, C, hidden)
    assert M % tile_m == 0

    tile = pl.BlockSpec((T, tile_m, C), lambda i: (0, i, 0))
    return pl.pallas_call(
        functools.partial(_mlp_kernel, inv_tau=1.0 / tau, threshold=threshold),
        grid=(M // tile_m,),
        in_specs=[tile,
                  pl.BlockSpec((C, hidden), lambda i: (0, 0)),
                  pl.BlockSpec((1, hidden), lambda i: (0, 0)),
                  pl.BlockSpec((hidden, C), lambda i: (0, 0)),
                  pl.BlockSpec((1, C), lambda i: (0, 0))],
        out_specs=tile,
        out_shape=jax.ShapeDtypeStruct((T, M, C), jnp.float32),
        compiler_params=_compiler_params(),
    )(x, w1, o1, w2, o2)


# ---------------- parameter setup (plain JAX glue) ----------------

def bn_fold(gamma, beta, mean, var, conv_bias=None):
    """Eval-mode BN folded to per-channel (scale, offset); conv bias folded in."""
    scale = gamma / jnp.sqrt(var + EPS)
    offset = beta - mean * scale
    if conv_bias is not None:
        offset = offset + conv_bias * scale
    return scale, offset


def init_params(key, embed_dim, mlp_ratio):
    hidden = int(embed_dim * mlp_ratio)
    keys = iter(jax.random.split(key, 48))

    def w(cin, cout):
        return 0.1 * jax.random.normal(next(keys), (cin, cout), jnp.float32)

    def bn(c):
        gamma = 1.0 + 0.1 * jax.random.normal(next(keys), (c,), jnp.float32)
        beta = 0.1 * jax.random.normal(next(keys), (c,), jnp.float32)
        mean = 0.1 * jax.random.normal(next(keys), (c,), jnp.float32)
        var = 1.0 + 0.1 * jnp.abs(jax.random.normal(next(keys), (c,), jnp.float32))
        return gamma, beta, mean, var

    def fold(wmat, c_out, conv_bias=None):
        scale, offset = bn_fold(*bn(c_out), conv_bias=conv_bias)
        # BN scale folded into the weight columns; only the offset add stays in-kernel.
        return (wmat * scale[None, :]).astype(jnp.bfloat16), offset.reshape(1, -1)

    p = {}
    # SSA: q/k/v Conv1d (bias=False) + BatchNorm1d, fused into one (C, 3C) weight
    ws, os_ = [], []
    for _ in ("q", "k", "v"):
        wf, of = fold(w(embed_dim, embed_dim), embed_dim)
        ws.append(wf)
        os_.append(of)
    p["qkv_w"] = jnp.concatenate(ws, axis=1)
    p["qkv_o"] = jnp.concatenate(os_, axis=1)
    # SSA: proj Conv1d (bias=False) + BatchNorm1d
    p["proj_w"], p["proj_o"] = fold(w(embed_dim, embed_dim), embed_dim)
    # MLP: fc1/fc2 Conv2d 1x1 (with bias) + BatchNorm2d
    fc1_b = 0.1 * jax.random.normal(next(keys), (hidden,), jnp.float32)
    p["fc1_w"], p["fc1_o"] = fold(w(embed_dim, hidden), hidden, conv_bias=fc1_b)
    fc2_b = 0.1 * jax.random.normal(next(keys), (embed_dim,), jnp.float32)
    p["fc2_w"], p["fc2_o"] = fold(w(hidden, embed_dim), embed_dim, conv_bias=fc2_b)
    return p


# ---------------- Block forward ----------------

def block_forward(x, p, *, seq_n, num_heads, tau, threshold, attn_scale):
    """x: (T, M, C) with M = B * H * W (batch-major rows).  Returns (T, M, C)."""
    x1 = ssa_block(x, p["qkv_w"], p["qkv_o"], p["proj_w"], p["proj_o"],
                   seq_n=seq_n, num_heads=num_heads, attn_scale=attn_scale,
                   tau=tau, threshold=threshold)                 # x + attn(x)
    return mlp_block(x1, p["fc1_w"], p["fc1_o"], p["fc2_w"], p["fc2_o"],
                     tau=tau, threshold=threshold)               # x1 + mlp(x1)


# ---------------- main ----------------

if __name__ == "__main__":
    embed_dim, num_heads, step = 32, 4, 2
    mlp_ratio, attn_scale = 4.0, 0.125
    tau, threshold = 2.0, 1.0
    B, Himg, Wimg = 2, 4, 4
    N = Himg * Wimg

    key = jax.random.PRNGKey(0)
    kx, kp = jax.random.split(key)

    # PyTorch-convention input: (T*B, C, H, W)
    x_nchw = jax.random.normal(kx, (step * B, embed_dim, Himg, Wimg), jnp.float32)

    # convert to kernel layout (T, M, C) with M = B*H*W, channels on the lane axis
    x = (x_nchw.reshape(step, B, embed_dim, Himg, Wimg)
               .transpose(0, 1, 3, 4, 2)
               .reshape(step, B * N, embed_dim))

    params = init_params(kp, embed_dim, mlp_ratio)

    out = block_forward(x, params, seq_n=N, num_heads=num_heads, tau=tau,
                        threshold=threshold, attn_scale=attn_scale)
    out = jax.block_until_ready(out)

    # convert back to PyTorch NCHW layout (T*B, C, H, W)
    out_nchw = (out.reshape(step, B, Himg, Wimg, embed_dim)
                   .transpose(0, 1, 4, 2, 3)
                   .reshape(step * B, embed_dim, Himg, Wimg))
    assert out_nchw.shape == x_nchw.shape
    assert bool(jnp.all(jnp.isfinite(out_nchw)))
    print("KERNEL_OK")
</pallas_src>

<mosaic_0001>
module attributes {stable_mosaic.version = 11 : i64} {
  func.func @_ssa_kernel(%arg0: i32, %arg1: memref<2x16x32xf32, #tpu.memory_space<vmem>>, %arg2: memref<32x96xbf16, #tpu.memory_space<vmem>>, %arg3: memref<1x96xf32, #tpu.memory_space<vmem>>, %arg4: memref<32x32xbf16, #tpu.memory_space<vmem>>, %arg5: memref<1x32xf32, #tpu.memory_space<vmem>>, %arg6: memref<2x16x32xf32, #tpu.memory_space<vmem>>) attributes {dimension_semantics = [#tpu.dimension_semantics<parallel>], iteration_bounds = array<i64: 2>, scalar_prefetch = 0 : i64, scratch_operands = 0 : i64, tpu.core_type = #tpu.core_type<tc>, window_params = [{transform_indices = @transform_0, window_bounds = array<i64: 2, 16, 32>}, {pipeline_mode = #tpu.pipeline_mode<synchronous>, transform_indices = @transform_1, window_bounds = array<i64: 32, 96>}, {pipeline_mode = #tpu.pipeline_mode<synchronous>, transform_indices = @transform_2, window_bounds = array<i64: 1, 96>}, {pipeline_mode = #tpu.pipeline_mode<synchronous>, transform_indices = @transform_3, window_bounds = array<i64: 32, 32>}, {pipeline_mode = #tpu.pipeline_mode<synchronous>, transform_indices = @transform_4, window_bounds = array<i64: 1, 32>}, {transform_indices = @transform_5, window_bounds = array<i64: 2, 16, 32>}]} {
    %c0 = arith.constant 0 : index
    %c0_0 = arith.constant 0 : index
    %c0_1 = arith.constant 0 : index
    %0 = vector.load %arg1[%c0, %c0_0, %c0_1] : memref<2x16x32xf32, #tpu.memory_space<vmem>>, vector<1x16x32xf32>
    %1 = vector.shape_cast %0 : vector<1x16x32xf32> to vector<16x32xf32>
    %c1 = arith.constant 1 : index
    %c0_2 = arith.constant 0 : index
    %c0_3 = arith.constant 0 : index
    %2 = vector.load %arg1[%c1, %c0_2, %c0_3] : memref<2x16x32xf32, #tpu.memory_space<vmem>>, vector<1x16x32xf32>
    %3 = vector.shape_cast %2 : vector<1x16x32xf32> to vector<16x32xf32>
    %cst = arith.constant 0.000000e+00 : f32
    %4 = vector.broadcast %cst : f32 to vector<16x32xf32>
    %5 = arith.subf %1, %4 : vector<16x32xf32>
    %cst_4 = arith.constant 5.000000e-01 : f32
    %6 = vector.broadcast %cst_4 : f32 to vector<16x32xf32>
    %7 = arith.mulf %5, %6 : vector<16x32xf32>
    %8 = arith.addf %4, %7 : vector<16x32xf32>
    %cst_5 = arith.constant 1.000000e+00 : f32
    %9 = vector.broadcast %cst_5 : f32 to vector<16x32xf32>
    %10 = arith.cmpf oge, %8, %9 : vector<16x32xf32>
    %11 = arith.extui %10 : vector<16x32xi1> to vector<16x32xi32>
    %12 = arith.sitofp %11 : vector<16x32xi32> to vector<16x32xf32>
    %13 = arith.truncf %12 : vector<16x32xf32> to vector<16x32xbf16>
    %cst_6 = arith.constant 0.000000e+00 : f32
    %14 = vector.broadcast %cst_6 : f32 to vector<16x32xf32>
    %15 = arith.select %10, %14, %8 : vector<16x32xi1>, vector<16x32xf32>
    %16 = arith.subf %3, %15 : vector<16x32xf32>
    %cst_7 = arith.constant 5.000000e-01 : f32
    %17 = vector.broadcast %cst_7 : f32 to vector<16x32xf32>
    %18 = arith.mulf %16, %17 : vector<16x32xf32>
    %19 = arith.addf %15, %18 : vector<16x32xf32>
    %cst_8 = arith.constant 1.000000e+00 : f32
    %20 = vector.broadcast %cst_8 : f32 to vector<16x32xf32>
    %21 = arith.cmpf oge, %19, %20 : vector<16x32xf32>
    %22 = arith.extui %21 : vector<16x32xi1> to vector<16x32xi32>
    %23 = arith.sitofp %22 : vector<16x32xi32> to vector<16x32xf32>
    %24 = arith.truncf %23 : vector<16x32xf32> to vector<16x32xbf16>
    %25 = tpu.concatenate %13, %24 in 0 : vector<16x32xbf16>, vector<16x32xbf16> -> vector<32x32xbf16>
    %c0_9 = arith.constant 0 : index
    %c0_10 = arith.constant 0 : index
    %26 = vector.load %arg2[%c0_9, %c0_10] : memref<32x96xbf16, #tpu.memory_space<vmem>>, vector<32x96xbf16>
    %cst_11 = arith.constant dense<0.000000e+00> : vector<32x96xf32>
    %27 = tpu.matmul %25, %26, %cst_11 {dimension_numbers = #tpu.dot_dimension_numbers<[1], [0], [0], [1], [0, 0, 1, 1], [], []>} : vector<32x32xbf16>, vector<32x96xbf16>, vector<32x96xf32> -> vector<32x96xf32>
    %c0_12 = arith.constant 0 : index
    %c0_13 = arith.constant 0 : index
    %28 = vector.load %arg3[%c0_12, %c0_13] : memref<1x96xf32, #tpu.memory_space<vmem>>, vector<1x96xf32>
    %29 = vector.broadcast %28 : vector<1x96xf32> to vector<32x96xf32>
    %30 = arith.addf %27, %29 : vector<32x96xf32>
    %31 = vector.extract_strided_slice %30 {offsets = [0, 0], sizes = [16, 96], strides = [1, 1]} : vector<32x96xf32> to vector<16x96xf32>
    %32 = vector.extract_strided_slice %30 {offsets = [16, 0], sizes = [16, 96], strides = [1, 1]} : vector<32x96xf32> to vector<16x96xf32>
    %cst_14 = arith.constant 0.000000e+00 : f32
    %33 = vector.broadcast %cst_14 : f32 to vector<16x96xf32>
    %34 = arith.subf %31, %33 : vector<16x96xf32>
    %cst_15 = arith.constant 5.000000e-01 : f32
    %35 = vector.broadcast %cst_15 : f32 to vector<16x96xf32>
    %36 = arith.mulf %34, %35 : vector<16x96xf32>
    %37 = arith.addf %33, %36 : vector<16x96xf32>
    %cst_16 = arith.constant 1.000000e+00 : f32
    %38 = vector.broadcast %cst_16 : f32 to vector<16x96xf32>
    %39 = arith.cmpf oge, %37, %38 : vector<16x96xf32>
    %40 = arith.extui %39 : vector<16x96xi1> to vector<16x96xi32>
    %41 = arith.sitofp %40 : vector<16x96xi32> to vector<16x96xf32>
    %42 = arith.truncf %41 : vector<16x96xf32> to vector<16x96xbf16>
    %cst_17 = arith.constant 0.000000e+00 : f32
    %43 = vector.broadcast %cst_17 : f32 to vector<16x96xf32>
    %44 = arith.select %39, %43, %37 : vector<16x96xi1>, vector<16x96xf32>
    %45 = arith.subf %32, %44 : vector<16x96xf32>
    %cst_18 = arith.constant 5.000000e-01 : f32
    %46 = vector.broadcast %cst_18 : f32 to vector<16x96xf32>
    %47 = arith.mulf %45, %46 : vector<16x96xf32>
    %48 = arith.addf %44, %47 : vector<16x96xf32>
    %cst_19 = arith.constant 1.000000e+00 : f32
    %49 = vector.broadcast %cst_19 : f32 to vector<16x96xf32>
    %50 = arith.cmpf oge, %48, %49 : vector<16x96xf32>
    %51 = arith.extui %50 : vector<16x96xi1> to vector<16x96xi32>
    %52 = arith.sitofp %51 : vector<16x96xi32> to vector<16x96xf32>
    %53 = arith.truncf %52 : vector<16x96xf32> to vector<16x96xbf16>
    %54 = tpu.concatenate %42, %53 in 0 : vector<16x96xbf16>, vector<16x96xbf16> -> vector<32x96xbf16>
    %55 = vector.shape_cast %54 : vector<32x96xbf16> to vector<2x16x96xbf16>
    %56 = vector.extract_strided_slice %55 {offsets = [0, 0, 0], sizes = [2, 16, 32], strides = [1, 1, 1]} : vector<2x16x96xbf16> to vector<2x16x32xbf16>
    %57 = vector.extract_strided_slice %55 {offsets = [0, 0, 32], sizes = [2, 16, 32], strides = [1, 1, 1]} : vector<2x16x96xbf16> to vector<2x16x32xbf16>
    %58 = vector.extract_strided_slice %55 {offsets = [0, 0, 64], sizes = [2, 16, 32], strides = [1, 1, 1]} : vector<2x16x96xbf16> to vector<2x16x32xbf16>
    %59 = vector.extract_strided_slice %56 {offsets = [0, 0, 0], sizes = [2, 16, 8], strides = [1, 1, 1]} : vector<2x16x32xbf16> to vector<2x16x8xbf16>
    %60 = vector.extract_strided_slice %57 {offsets = [0, 0, 0], sizes = [2, 16, 8], strides = [1, 1, 1]} : vector<2x16x32xbf16> to vector<2x16x8xbf16>
    "tpu.trace_start"() <{level = 10 : i32, message = "znd,zmd->znm"}> : () -> ()
    %cst_20 = arith.constant dense<0.000000e+00> : vector<2x16x16xf32>
    %61 = tpu.matmul %59, %60, %cst_20 {dimension_numbers = #tpu.dot_dimension_numbers<[2], [2], [1], [1], [0, 0, 0, 1, 1, 1], [0], [0]>} : vector<2x16x8xbf16>, vector<2x16x8xbf16>, vector<2x16x16xf32> -> vector<2x16x16xf32>
    "tpu.trace_stop"() : () -> ()
    %62 = arith.truncf %61 : vector<2x16x16xf32> to vector<2x16x16xbf16>
    %63 = vector.extract_strided_slice %58 {offsets = [0, 0, 0], sizes = [2, 16, 8], strides = [1, 1, 1]} : vector<2x16x32xbf16> to vector<2x16x8xbf16>
    "tpu.trace_start"() <{level = 10 : i32, message = "znm,zmd->znd"}> : () -> ()
    %cst_21 = arith.constant dense<0.000000e+00> : vector<2x16x8xf32>
    %64 = tpu.matmul %62, %63, %cst_21 {dimension_numbers = #tpu.dot_dimension_numbers<[2], [1], [1], [2], [0, 0, 0, 1, 1, 2], [0], [0]>} : vector<2x16x16xbf16>, vector<2x16x8xbf16>, vector<2x16x8xf32> -> vector<2x16x8xf32>
    "tpu.trace_stop"() : () -> ()
    %65 = vector.extract_strided_slice %56 {offsets = [0, 0, 8], sizes = [2, 16, 8], strides = [1, 1, 1]} : vector<2x16x32xbf16> to vector<2x16x8xbf16>
    %66 = vector.extract_strided_slice %57 {offsets = [0, 0, 8], sizes = [2, 16, 8], strides = [1, 1, 1]} : vector<2x16x32xbf16> to vector<2x16x8xbf16>
    "tpu.trace_start"() <{level = 10 : i32, message = "znd,zmd->znm"}> : () -> ()
    %cst_22 = arith.constant dense<0.000000e+00> : vector<2x16x16xf32>
    %67 = tpu.matmul %65, %66, %cst_22 {dimension_numbers = #tpu.dot_dimension_numbers<[2], [2], [1], [1], [0, 0, 0, 1, 1, 1], [0], [0]>} : vector<2x16x8xbf16>, vector<2x16x8xbf16>, vector<2x16x16xf32> -> vector<2x16x16xf32>
    "tpu.trace_stop"() : () -> ()
    %68 = arith.truncf %67 : vector<2x16x16xf32> to vector<2x16x16xbf16>
    %69 = vector.extract_strided_slice %58 {offsets = [0, 0, 8], sizes = [2, 16, 8], strides = [1, 1, 1]} : vector<2x16x32xbf16> to vector<2x16x8xbf16>
    "tpu.trace_start"() <{level = 10 : i32, message = "znm,zmd->znd"}> : () -> ()
    %cst_23 = arith.constant dense<0.000000e+00> : vector<2x16x8xf32>
    %70 = tpu.matmul %68, %69, %cst_23 {dimension_numbers = #tpu.dot_dimension_numbers<[2], [1], [1], [2], [0, 0, 0, 1, 1, 2], [0], [0]>} : vector<2x16x16xbf16>, vector<2x16x8xbf16>, vector<2x16x8xf32> -> vector<2x16x8xf32>
    "tpu.trace_stop"() : () -> ()
    %71 = vector.extract_strided_slice %56 {offsets = [0, 0, 16], sizes = [2, 16, 8], strides = [1, 1, 1]} : vector<2x16x32xbf16> to vector<2x16x8xbf16>
    %72 = vector.extract_strided_slice %57 {offsets = [0, 0, 16], sizes = [2, 16, 8], strides = [1, 1, 1]} : vector<2x16x32xbf16> to vector<2x16x8xbf16>
    "tpu.trace_start"() <{level = 10 : i32, message = "znd,zmd->znm"}> : () -> ()
    %cst_24 = arith.constant dense<0.000000e+00> : vector<2x16x16xf32>
    %73 = tpu.matmul %71, %72, %cst_24 {dimension_numbers = #tpu.dot_dimension_numbers<[2], [2], [1], [1], [0, 0, 0, 1, 1, 1], [0], [0]>} : vector<2x16x8xbf16>, vector<2x16x8xbf16>, vector<2x16x16xf32> -> vector<2x16x16xf32>
    "tpu.trace_stop"() : () -> ()
    %74 = arith.truncf %73 : vector<2x16x16xf32> to vector<2x16x16xbf16>
    %75 = vector.extract_strided_slice %58 {offsets = [0, 0, 16], sizes = [2, 16, 8], strides = [1, 1, 1]} : vector<2x16x32xbf16> to vector<2x16x8xbf16>
    "tpu.trace_start"() <{level = 10 : i32, message = "znm,zmd->znd"}> : () -> ()
    %cst_25 = arith.constant dense<0.000000e+00> : vector<2x16x8xf32>
    %76 = tpu.matmul %74, %75, %cst_25 {dimension_numbers = #tpu.dot_dimension_numbers<[2], [1], [1], [2], [0, 0, 0, 1, 1, 2], [0], [0]>} : vector<2x16x16xbf16>, vector<2x16x8xbf16>, vector<2x16x8xf32> -> vector<2x16x8xf32>
    "tpu.trace_stop"() : () -> ()
    %77 = vector.extract_strided_slice %56 {offsets = [0, 0, 24], sizes = [2, 16, 8], strides = [1, 1, 1]} : vector<2x16x32xbf16> to vector<2x16x8xbf16>
    %78 = vector.extract_strided_slice %57 {offsets = [0, 0, 24], sizes = [2, 16, 8], strides = [1, 1, 1]} : vector<2x16x32xbf16> to vector<2x16x8xbf16>
    "tpu.trace_start"() <{level = 10 : i32, message = "znd,zmd->znm"}> : () -> ()
    %cst_26 = arith.constant dense<0.000000e+00> : vector<2x16x16xf32>
    %79 = tpu.matmul %77, %78, %cst_26 {dimension_numbers = #tpu.dot_dimension_numbers<[2], [2], [1], [1], [0, 0, 0, 1, 1, 1], [0], [0]>} : vector<2x16x8xbf16>, vector<2x16x8xbf16>, vector<2x16x16xf32> -> vector<2x16x16xf32>
    "tpu.trace_stop"() : () -> ()
    %80 = arith.truncf %79 : vector<2x16x16xf32> to vector<2x16x16xbf16>
    %81 = vector.extract_strided_slice %58 {offsets = [0, 0, 24], sizes = [2, 16, 8], strides = [1, 1, 1]} : vector<2x16x32xbf16> to vector<2x16x8xbf16>
    "tpu.trace_start"() <{level = 10 : i32, message = "znm,zmd->znd"}> : () -> ()
    %cst_27 = arith.constant dense<0.000000e+00> : vector<2x16x8xf32>
    %82 = tpu.matmul %80, %81, %cst_27 {dimension_numbers = #tpu.dot_dimension_numbers<[2], [1], [1], [2], [0, 0, 0, 1, 1, 2], [0], [0]>} : vector<2x16x16xbf16>, vector<2x16x8xbf16>, vector<2x16x8xf32> -> vector<2x16x8xf32>
    "tpu.trace_stop"() : () -> ()
    %83 = tpu.concatenate %64, %70, %76, %82 in 2 : vector<2x16x8xf32>, vector<2x16x8xf32>, vector<2x16x8xf32>, vector<2x16x8xf32> -> vector<2x16x32xf32>
    %cst_28 = arith.constant 1.250000e-01 : f32
    %84 = vector.broadcast %cst_28 : f32 to vector<2x16x32xf32>
    %85 = arith.mulf %83, %84 : vector<2x16x32xf32>
    %86 = vector.shape_cast %85 : vector<2x16x32xf32> to vector<32x32xf32>
    %87 = vector.extract_strided_slice %86 {offsets = [0, 0], sizes = [16, 32], strides = [1, 1]} : vector<32x32xf32> to vector<16x32xf32>
    %88 = vector.extract_strided_slice %86 {offsets = [16, 0], sizes = [16, 32], strides = [1, 1]} : vector<32x32xf32> to vector<16x32xf32>
    %cst_29 = arith.constant 0.000000e+00 : f32
    %89 = vector.broadcast %cst_29 : f32 to vector<16x32xf32>
    %90 = arith.subf %87, %89 : vector<16x32xf32>
    %cst_30 = arith.constant 5.000000e-01 : f32
    %91 = vector.broadcast %cst_30 : f32 to vector<16x32xf32>
    %92 = arith.mulf %90, %91 : vector<16x32xf32>
    %93 = arith.addf %89, %92 : vector<16x32xf32>
    %cst_31 = arith.constant 5.000000e-01 : f32
    %94 = vector.broadcast %cst_31 : f32 to vector<16x32xf32>
    %95 = arith.cmpf oge, %93, %94 : vector<16x32xf32>
    %96 = arith.extui %95 : vector<16x32xi1> to vector<16x32xi32>
    %97 = arith.sitofp %96 : vector<16x32xi32> to vector<16x32xf32>
    %98 = arith.truncf %97 : vector<16x32xf32> to vector<16x32xbf16>
    %cst_32 = arith.constant 0.000000e+00 : f32
    %99 = vector.broadcast %cst_32 : f32 to vector<16x32xf32>
    %100 = arith.select %95, %99, %93 : vector<16x32xi1>, vector<16x32xf32>
    %101 = arith.subf %88, %100 : vector<16x32xf32>
    %cst_33 = arith.constant 5.000000e-01 : f32
    %102 = vector.broadcast %cst_33 : f32 to vector<16x32xf32>
    %103 = arith.mulf %101, %102 : vector<16x32xf32>
    %104 = arith.addf %100, %103 : vector<16x32xf32>
    %cst_34 = arith.constant 5.000000e-01 : f32
    %105 = vector.broadcast %cst_34 : f32 to vector<16x32xf32>
    %106 = arith.cmpf oge, %104, %105 : vector<16x32xf32>
    %107 = arith.extui %106 : vector<16x32xi1> to vector<16x32xi32>
    %108 = arith.sitofp %107 : vector<16x32xi32> to vector<16x32xf32>
    %109 = arith.truncf %108 : vector<16x32xf32> to vector<16x32xbf16>
    %110 = tpu.concatenate %98, %109 in 0 : vector<16x32xbf16>, vector<16x32xbf16> -> vector<32x32xbf16>
    %c0_35 = arith.constant 0 : index
    %c0_36 = arith.constant 0 : index
    %111 = vector.load %arg4[%c0_35, %c0_36] : memref<32x32xbf16, #tpu.memory_space<vmem>>, vector<32x32xbf16>
    %cst_37 = arith.constant dense<0.000000e+00> : vector<32x32xf32>
    %112 = tpu.matmul %110, %111, %cst_37 {dimension_numbers = #tpu.dot_dimension_numbers<[1], [0], [0], [1], [0, 0, 1, 1], [], []>} : vector<32x32xbf16>, vector<32x32xbf16>, vector<32x32xf32> -> vector<32x32xf32>
    %c0_38 = arith.constant 0 : index
    %c0_39 = arith.constant 0 : index
    %113 = vector.load %arg5[%c0_38, %c0_39] : memref<1x32xf32, #tpu.memory_space<vmem>>, vector<1x32xf32>
    %114 = vector.broadcast %113 : vector<1x32xf32> to vector<32x32xf32>
    %115 = arith.addf %112, %114 : vector<32x32xf32>
    %c0_40 = arith.constant 0 : index
    %c0_41 = arith.constant 0 : index
    %c0_42 = arith.constant 0 : index
    %116 = vector.load %arg1[%c0_40, %c0_41, %c0_42] : memref<2x16x32xf32, #tpu.memory_space<vmem>>, vector<1x16x32xf32>
    %117 = vector.shape_cast %116 : vector<1x16x32xf32> to vector<16x32xf32>
    %118 = vector.extract_strided_slice %115 {offsets = [0, 0], sizes = [16, 32], strides = [1, 1]} : vector<32x32xf32> to vector<16x32xf32>
    %119 = arith.addf %117, %118 : vector<16x32xf32>
    %c0_43 = arith.constant 0 : index
    %c0_44 = arith.constant 0 : index
    %c0_45 = arith.constant 0 : index
    %120 = vector.load %arg6[%c0_43, %c0_44, %c0_45] : memref<2x16x32xf32, #tpu.memory_space<vmem>>, vector<1x16x32xf32>
    %121 = vector.shape_cast %120 : vector<1x16x32xf32> to vector<16x32xf32>
    %122 = vector.shape_cast %119 : vector<16x32xf32> to vector<1x16x32xf32>
    tpu.vector_store %arg6[%c0_43, %c0_44, %c0_45], %122 {strides = array<i32>} : memref<2x16x32xf32, #tpu.memory_space<vmem>>, vector<1x16x32xf32>,
    %c1_46 = arith.constant 1 : index
    %c0_47 = arith.constant 0 : index
    %c0_48 = arith.constant 0 : index
    %123 = vector.load %arg1[%c1_46, %c0_47, %c0_48] : memref<2x16x32xf32, #tpu.memory_space<vmem>>, vector<1x16x32xf32>
    %124 = vector.shape_cast %123 : vector<1x16x32xf32> to vector<16x32xf32>
    %125 = vector.extract_strided_slice %115 {offsets = [16, 0], sizes = [16, 32], strides = [1, 1]} : vector<32x32xf32> to vector<16x32xf32>
    %126 = arith.addf %124, %125 : vector<16x32xf32>
    %c1_49 = arith.constant 1 : index
    %c0_50 = arith.constant 0 : index
    %c0_51 = arith.constant 0 : index
    %127 = vector.load %arg6[%c1_49, %c0_50, %c0_51] : memref<2x16x32xf32, #tpu.memory_space<vmem>>, vector<1x16x32xf32>
    %128 = vector.shape_cast %127 : vector<1x16x32xf32> to vector<16x32xf32>
    %129 = vector.shape_cast %126 : vector<16x32xf32> to vector<1x16x32xf32>
    tpu.vector_store %arg6[%c1_49, %c0_50, %c0_51], %129 {strides = array<i32>} : memref<2x16x32xf32, #tpu.memory_space<vmem>>, vector<1x16x32xf32>,
    return
  }
  func.func @transform_0(%arg0: i32) -> (i32, i32, i32) {
    %c0_i32 = arith.constant 0 : i32
    %c0_i32_0 = arith.constant 0 : i32
    %c0_i32_1 = arith.constant 0 : i32
    return %c0_i32, %arg0, %c0_i32_0 : i32, i32, i32
  }
  func.func @transform_1(%arg0: i32) -> (i32, i32) {
    %c0_i32 = arith.constant 0 : i32
    %c0_i32_0 = arith.constant 0 : i32
    %c0_i32_1 = arith.constant 0 : i32
    return %c0_i32, %c0_i32_0 : i32, i32
  }
  func.func @transform_2(%arg0: i32) -> (i32, i32) {
    %c0_i32 = arith.constant 0 : i32
    %c0_i32_0 = arith.constant 0 : i32
    %c0_i32_1 = arith.constant 0 : i32
    return %c0_i32, %c0_i32_0 : i32, i32
  }
  func.func @transform_3(%arg0: i32) -> (i32, i32) {
    %c0_i32 = arith.constant 0 : i32
    %c0_i32_0 = arith.constant 0 : i32
    %c0_i32_1 = arith.constant 0 : i32
    return %c0_i32, %c0_i32_0 : i32, i32
  }
  func.func @transform_4(%arg0: i32) -> (i32, i32) {
    %c0_i32 = arith.constant 0 : i32
    %c0_i32_0 = arith.constant 0 : i32
    %c0_i32_1 = arith.constant 0 : i32
    return %c0_i32, %c0_i32_0 : i32, i32
  }
  func.func @transform_5(%arg0: i32) -> (i32, i32, i32) {
    %c0_i32 = arith.constant 0 : i32
    %c0_i32_0 = arith.constant 0 : i32
    %c0_i32_1 = arith.constant 0 : i32
    return %c0_i32, %arg0, %c0_i32_0 : i32, i32, i32
  }
}

</mosaic_0001>

<llo_original>
// kernel: tpu_custom_call.1
$region0: #{tpu_custom_call.1}
  #allocation0 [shape = 'u32[]', space=smem, size = 0x4, offset = 0x4, fixed_abs, tag = 'smem constant byte address 0x4 - core index']
  #allocation1 [shape = 'u32[144,128]{1,0:T(1,128)}', space=vmem, size = 0x12000, scoped, tag = 'internal scratch']
  #allocation9 [shape = 's32[]', space=sflag, size = 0x4, offset = 0, fixed_abs, tag = 'sflag constant byte address 0x0 - dummy sync flag']
  #allocation11 [shape = 's32[]', space=sflag, size = 0x4, offset = 0, fixed_abs, tag = 'sflag constant byte address 0x0 - dummy sync flag']
  %s0 = inlined_call_operand.hbm [shape: f32[2,32,32], index: 0, kind: input, shape index: {}]
  %s1 = inlined_call_operand.hbm [shape: bf16[32,96], index: 1, kind: input, shape index: {}]
  %s2 = inlined_call_operand.vmem [shape: f32[1,96], index: 2, kind: input, shape index: {}]
  %s3 = inlined_call_operand.hbm [shape: bf16[32,32], index: 3, kind: input, shape index: {}]
  %s4 = inlined_call_operand.vmem [shape: f32[1,32], index: 4, kind: input, shape index: {}]
  %s5 = inlined_call_operand.hbm [shape: f32[2,32,32], index: 5, kind: output, shape index: {}]
  %s6 = sld [smem:[#allocation0]]
  $region65: #{tpu_custom_call.1} parent=0
    _
  %s8 = ssub.s32 1, %s6
  %s9 = scalar_select 0, %s8, %s6
  $region1: #{tpu_custom_call.1} parent=0
    #allocation2 [shape = 'u8[32768]{0}', space=vmem, size = 0x8000, scoped, tag = 'input window, operand 0']
    #allocation3 [shape = 's32[2]{0}', space=sflag, size = 0x8, scoped, tag = 'scoped memory for tpu_custom_call.1']
    #allocation4 [shape = 's32[2]{0}', space=sflag, size = 0x8, scoped, tag = 'scoped memory for tpu_custom_call.1']
    #allocation5 [shape = 'u8[8192]{0}', space=vmem, size = 0x2000, scoped, tag = 'input window, operand 1, single buffered']
    #allocation6 [shape = 's32[1]{0}', space=sflag, size = 0x4, scoped, tag = 'scoped memory for tpu_custom_call.1']
    #allocation7 [shape = 'u8[8192]{0}', space=vmem, size = 0x2000, scoped, tag = 'input window, operand 3, single buffered']
    #allocation8 [shape = 'u8[32768]{0}', space=vmem, size = 0x8000, scoped, tag = 'output window, operand 0']
    %10 = vsyncpa [#allocation3], 0
    %s11 = scalar_lea.sflag [#allocation3], 1
    %12 = vsyncpa %s11, 0
    %13 = vsyncpa [#allocation6], 0
    %14 = vsyncpa [#allocation4], 0
    %s15 = scalar_lea.sflag [#allocation4], 1
    %16 = vsyncpa %s15, 0
    loop: start=0, step=1, limit=4
    $region2: #{tpu_custom_call.1} parent=1 // loop_pre_header
      _
    $region3: #{tpu_custom_call.1} parent=1 // loop_header
      %s18 = sphi 0, %s22
      %p19 = scmp.ge.s32.totalorder %s18, 4
      %s28 = sphi 0, %s30
      %s31 = sphi 0, %s28
      %s32 = sphi 0, %s31
      %s48 = sphi 0, %s32
      %s52 = sphi 0, %s52
      %s54 = sphi 0, %s52
      %s55 = sphi 0, %s54
      %s69 = sphi 0, %s55
      %s73 = sphi 0, %s73
      %s75 = sphi 0, %s73
      %s76 = sphi 0, %s75
      %s90 = sphi 0, %s76
      %s94 = sphi 0, %s94
      %s96 = sphi 0, %s94
      %s97 = sphi 0, %s96
      %s111 = sphi 0, %s97
      %s115 = sphi 0, %s115
      %s117 = sphi 0, %s115
      %s118 = sphi 0, %s117
      %s132 = sphi 0, %s118
      %s138 = sphi 0, %s140
      %s141 = sphi 0, %s138
      %s142 = sphi 0, %s141
      %s158 = sphi 0, %s142
    $region4: #{tpu_custom_call.1} parent=1 // loop_header_branch
      %21 = sbr.rel (%p19) target = $region8
    $region5: #{tpu_custom_call.1} parent=1 // loop_body
      %s23 = ssub.s32 %s18, 1
      %s24 = ssub.s32 %s18, 2
      %s25 = sadd.s32 %s18, 1
      %s26 = ssub.s32 %s18, %s25
      %p27 = scmp.eq.s32.totalorder %s26, 0
      %s29 = sadd.s32 %s28, 1
      %s30 = scalar_select %p27, %s28, %s29
      %p33 = pneg %p27
      %p34 = scmp.eq.s32.totalorder %s18, 1
      %p35 = por %p33, %p34
      %p36 = scmp.ne.s32.totalorder %s28, %s31
      %p37 = scmp.eq.s32.totalorder %s18, 0
      %p38 = por %p36, %p37
      %p39 = scmp.ne.s32.totalorder %s28, %s31
      %p40 = scmp.eq.s32.totalorder %s23, 1
      %p41 = por %p39, %p40
      %p42 = scmp.ne.s32.totalorder %s31, %s32
      %p43 = scmp.eq.s32.totalorder %s23, 0
      %p44 = por %p42, %p43
      %p45 = scmp.ne.s32.totalorder %s31, %s32
      %p46 = scmp.eq.s32.totalorder %s24, 1
      %p47 = por %p45, %p46
      %p49 = scmp.ne.s32.totalorder %s32, %s48
      %p50 = scmp.eq.s32.totalorder %s24, 0
      %p51 = por %p49, %p50
      %s53 = sadd.s32 %s52, 1
      %p56 = scmp.eq.s32.totalorder %s18, 1
      %p57 = scmp.ne.s32.totalorder %s52, %s54
      %p58 = scmp.eq.s32.totalorder %s18, 0
      %p59 = por %p57, %p58
      %p60 = scmp.ne.s32.totalorder %s52, %s54
      %p61 = scmp.eq.s32.totalorder %s23, 1
      %p62 = por %p60, %p61
      %p63 = scmp.ne.s32.totalorder %s54, %s55
      %p64 = scmp.eq.s32.totalorder %s23, 0
      %p65 = por %p63, %p64
      %p66 = scmp.ne.s32.totalorder %s54, %s55
      %p67 = scmp.eq.s32.totalorder %s24, 1
      %p68 = por %p66, %p67
      %p70 = scmp.ne.s32.totalorder %s55, %s69
      %p71 = scmp.eq.s32.totalorder %s24, 0
      %p72 = por %p70, %p71
      %s74 = sadd.s32 %s73, 1
      %p77 = scmp.eq.s32.totalorder %s18, 1
      %p78 = scmp.ne.s32.totalorder %s73, %s75
      %p79 = scmp.eq.s32.totalorder %s18, 0
      %p80 = por %p78, %p79
      %p81 = scmp.ne.s32.totalorder %s73, %s75
      %p82 = scmp.eq.s32.totalorder %s23, 1
      %p83 = por %p81, %p82
      %p84 = scmp.ne.s32.totalorder %s75, %s76
      %p85 = scmp.eq.s32.totalorder %s23, 0
      %p86 = por %p84, %p85
      %p87 = scmp.ne.s32.totalorder %s75, %s76
      %p88 = scmp.eq.s32.totalorder %s24, 1
      %p89 = por %p87, %p88
      %p91 = scmp.ne.s32.totalorder %s76, %s90
      %p92 = scmp.eq.s32.totalorder %s24, 0
      %p93 = por %p91, %p92
      %s95 = sadd.s32 %s94, 1
      %p98 = scmp.eq.s32.totalorder %s18, 1
      %p99 = scmp.ne.s32.totalorder %s94, %s96
      %p100 = scmp.eq.s32.totalorder %s18, 0
      %p101 = por %p99, %p100
      %p102 = scmp.ne.s32.totalorder %s94, %s96
      %p103 = scmp.eq.s32.totalorder %s23, 1
      %p104 = por %p102, %p103
      %p105 = scmp.ne.s32.totalorder %s96, %s97
      %p106 = scmp.eq.s32.totalorder %s23, 0
      %p107 = por %p105, %p106
      %p108 = scmp.ne.s32.totalorder %s96, %s97
      %p109 = scmp.eq.s32.totalorder %s24, 1
      %p110 = por %p108, %p109
      %p112 = scmp.ne.s32.totalorder %s97, %s111
      %p113 = scmp.eq.s32.totalorder %s24, 0
      %p114 = por %p112, %p113
      %s116 = sadd.s32 %s115, 1
      %p119 = scmp.eq.s32.totalorder %s18, 1
      %p120 = scmp.ne.s32.totalorder %s115, %s117
      %p121 = scmp.eq.s32.totalorder %s18, 0
      %p122 = por %p120, %p121
      %p123 = scmp.ne.s32.totalorder %s115, %s117
      %p124 = scmp.eq.s32.totalorder %s23, 1
      %p125 = por %p123, %p124
      %p126 = scmp.ne.s32.totalorder %s117, %s118
      %p127 = scmp.eq.s32.totalorder %s23, 0
      %p128 = por %p126, %p127
      %p129 = scmp.ne.s32.totalorder %s117, %s118
      %p130 = scmp.eq.s32.totalorder %s24, 1
      %p131 = por %p129, %p130
      %p133 = scmp.ne.s32.totalorder %s118, %s132
      %p134 = scmp.eq.s32.totalorder %s24, 0
      %p135 = por %p133, %p134
      %s136 = ssub.s32 %s18, %s25
      %p137 = scmp.eq.s32.totalorder %s136, 0
      %s139 = sadd.s32 %s138, 1
      %s140 = scalar_select %p137, %s138, %s139
      %p143 = pneg %p137
      %p144 = scmp.eq.s32.totalorder %s18, 1
      %p145 = por %p143, %p144
      %p146 = scmp.ne.s32.totalorder %s138, %s141
      %p147 = scmp.eq.s32.totalorder %s18, 0
      %p148 = por %p146, %p147
      %p149 = scmp.ne.s32.totalorder %s138, %s141
      %p150 = scmp.eq.s32.totalorder %s23, 1
      %p151 = por %p149, %p150
      %p152 = scmp.ne.s32.totalorder %s141, %s142
      %p153 = scmp.eq.s32.totalorder %s23, 0
      %p154 = por %p152, %p153
      %p155 = scmp.ne.s32.totalorder %s141, %s142
      %p156 = scmp.eq.s32.totalorder %s24, 1
      %p157 = por %p155, %p156
      %p159 = scmp.ne.s32.totalorder %s142, %s158
      %p160 = scmp.eq.s32.totalorder %s24, 0
      %p161 = por %p159, %p160
      %p162 = scmp.le.s32.totalorder 1, %s18
      %p163 = scmp.lt.s32.totalorder %s18, 3
      %p164 = pnand %p162, %p163
      %p165 = pneg %p164
      // Predicated region
      $region9: #{tpu_custom_call.1} parent=5 // pred_check
        _
      $region10: #{tpu_custom_call.1} parent=5 // pred_check_branch
        %167 = sbr.rel (%p164) target = $region12
      $region11: #{tpu_custom_call.1} parent=5 // pred_region
        %s168 = ssub.s32 %s18, 1
        // Predicated region
        $region13: #{tpu_custom_call.1} parent=11 // pred_check
          %p169 = pneg %p65
        $region14: #{tpu_custom_call.1} parent=11 // pred_check_branch
          %171 = sbr.rel (%p169) target = $region16
        $region15: #{tpu_custom_call.1} parent=11 // pred_region
          %s173 = ssub.s32 256, 256
          %174 = vsyncadd [#allocation6], %s173
          %s175 = sshll.u32 [#allocation5], 4
          %s176 = int_to_ptr.vmem [resolvable:$true] %s175
          %181 = dma.hbm_to_vmem [thread:$0]  %s1, 256, %s176, [#allocation6], 64, 64, 4
        $region16: #{tpu_custom_call.1} parent=11 // pred_fallthru
          _
        // Predicated region
        $region17: #{tpu_custom_call.1} parent=11 // pred_check
          %p182 = pneg %p86
        $region18: #{tpu_custom_call.1} parent=11 // pred_check_branch
          %184 = sbr.rel (%p182) target = $region20
        $region19: #{tpu_custom_call.1} parent=11 // pred_region
          _
        $region20: #{tpu_custom_call.1} parent=11 // pred_fallthru
          _
        // Predicated region
        $region21: #{tpu_custom_call.1} parent=11 // pred_check
          %p185 = pneg %p107
        $region22: #{tpu_custom_call.1} parent=11 // pred_check_branch
          %187 = sbr.rel (%p185) target = $region24
        $region23: #{tpu_custom_call.1} parent=11 // pred_region
          %s189 = ssub.s32 256, 256
          %190 = vsyncadd [#allocation6], %s189
          %s191 = sshll.u32 [#allocation7], 4
          %s192 = int_to_ptr.vmem [resolvable:$true] %s191
          %197 = dma.hbm_to_vmem [thread:$0]  %s3, 256, %s192, [#allocation6], 64, 64, 4
        $region24: #{tpu_custom_call.1} parent=11 // pred_fallthru
          _
        // Predicated region
        $region25: #{tpu_custom_call.1} parent=11 // pred_check
          %p198 = pneg %p128
        $region26: #{tpu_custom_call.1} parent=11 // pred_check_branch
          %200 = sbr.rel (%p198) target = $region28
        $region27: #{tpu_custom_call.1} parent=11 // pred_region
          _
        $region28: #{tpu_custom_call.1} parent=11 // pred_fallthru
          _
      $region12: #{tpu_custom_call.1} parent=5 // pred_fallthru
        _
      %p201 = scmp.lt.s32.totalorder %s18, 2
      // Predicated region
      $region29: #{tpu_custom_call.1} parent=5 // pred_check
        %p202 = pneg %p201
      $region30: #{tpu_custom_call.1} parent=5 // pred_check_branch
        %204 = sbr.rel (%p202) target = $region32
      $region31: #{tpu_custom_call.1} parent=5 // pred_region
        // Predicated region
        $region33: #{tpu_custom_call.1} parent=31 // pred_check
          %p205 = pneg %p38
        $region34: #{tpu_custom_call.1} parent=31 // pred_check_branch
          %207 = sbr.rel (%p205) target = $region36
        $region35: #{tpu_custom_call.1} parent=31 // pred_region
          #allocation10 [shape = 'u32[6]{0}', space=smem, size = 0x18, scoped, tag = 'DMA stride descriptor']
          %s208 = sand.u32 %s28, 1
          %s209 = scalar_lea.sflag [#allocation3], %s208
          %s210 = sand.u32 %s28, 1
          %s211 = smul.addr %s210, 32
          %s212 = scalar_lea.vmem [#allocation2], %s211
          %s213 = smul.u32 2, %s18
          %s215 = ssub.s32 512, 512
          %216 = vsyncadd %s209, %s215
          %s217 = smul.addr %s213, 128
          %s218 = scalar_lea.hbm %s0, %s217
          %s220 = sshll.u32 1, 14
          %s221 = sxor.u32 4294967295, %s220
          %s223 = sld [smem:[#allocation0]]
          %s224 = sadd.s32 2, %s223
          %s226 = sshll.u32 7, 26
          %s227 = sxor.u32 4294967295, %s226
          %s228 = sand.u32 0, %s227
          %s229 = sshll.u32 %s224, 26
          %s230 = sor.u32 %s228, %s229
          %s231 = sshll.u32 %s212, 4
          %s232 = int_to_ptr.vmem [resolvable:$true] %s231
          %238 = sst [smem:[#allocation10]] 512
          %s239 = scalar_lea.smem [#allocation10], 1
          %240 = sst [smem:[%s239]] 256
          %s241 = scalar_lea.smem [#allocation10], 2
          %242 = sst [smem:[%s241]] 2
          %s243 = scalar_lea.smem [#allocation10], 3
          %244 = sst [smem:[%s243]] 128
          %s245 = scalar_lea.smem [#allocation10], 4
          %246 = sst [smem:[%s245]] 128
          %s247 = scalar_lea.smem [#allocation10], 5
          %248 = sst [smem:[%s247]] 8
          %250 = dma.general %s218, 512, %s232, %s209, [#allocation9], [#allocation10], %s230, 0
        $region36: #{tpu_custom_call.1} parent=31 // pred_fallthru
          _
      $region32: #{tpu_custom_call.1} parent=5 // pred_fallthru
        _
      %p251 = scmp.le.s32.totalorder 1, %s18
      %p252 = scmp.lt.s32.totalorder %s18, 3
      %p253 = pnand %p251, %p252
      %p254 = pneg %p253
      // Predicated region
      $region37: #{tpu_custom_call.1} parent=5 // pred_check
        _
      $region38: #{tpu_custom_call.1} parent=5 // pred_check_branch
        %256 = sbr.rel (%p253) target = $region40
      $region39: #{tpu_custom_call.1} parent=5 // pred_region
        %s257 = ssub.s32 %s18, 1
        %s258 = sand.u32 %s31, 1
        %s259 = scalar_lea.sflag [#allocation3], %s258
        %s260 = sand.u32 %s31, 1
        %s261 = smul.addr %s260, 32
        %s262 = scalar_lea.vmem [#allocation2], %s261
        // Predicated region
        $region41: #{tpu_custom_call.1} parent=39 // pred_check
          %p263 = pneg %p44
        $region42: #{tpu_custom_call.1} parent=39 // pred_check_branch
          %265 = sbr.rel (%p263) target = $region44
        $region43: #{tpu_custom_call.1} parent=39 // pred_region
          %266 = dma.done %s259, 512
        $region44: #{tpu_custom_call.1} parent=39 // pred_fallthru
          _
        // Predicated region
        $region45: #{tpu_custom_call.1} parent=39 // pred_check
          %p267 = pneg %p65
        $region46: #{tpu_custom_call.1} parent=39 // pred_check_branch
          %269 = sbr.rel (%p267) target = $region48
        $region47: #{tpu_custom_call.1} parent=39 // pred_region
          %270 = dma.done [#allocation6], 256
        $region48: #{tpu_custom_call.1} parent=39 // pred_fallthru
          _
        // Predicated region
        $region49: #{tpu_custom_call.1} parent=39 // pred_check
          %p271 = pneg %p107
        $region50: #{tpu_custom_call.1} parent=39 // pred_check_branch
          %273 = sbr.rel (%p271) target = $region52
        $region51: #{tpu_custom_call.1} parent=39 // pred_region
          %274 = dma.done [#allocation6], 256
        $region52: #{tpu_custom_call.1} parent=39 // pred_fallthru
          _
        %s275 = sand.u32 %s31, 1
        %s276 = scalar_lea.sflag [#allocation3], %s275
        %s277 = sand.u32 %s31, 1
        %s278 = smul.addr %s277, 32
        %s279 = scalar_lea.vmem [#allocation2], %s278
        %p280 = pneg %p44
        %p281 = pneg %p41
        %p282 = pneg %p65
        %p283 = pneg %p62
        %p284 = pneg %p86
        %p285 = pneg %p83
        %p286 = pneg %p107
        %p287 = pneg %p104
        %p288 = pneg %p128
        %p289 = pneg %p125
        %p290 = pneg %p154
        %p291 = pneg %p151
        %s292 = sand.u32 %s141, 1
        %s293 = scalar_lea.sflag [#allocation4], %s292
        %s294 = sand.u32 %s141, 1
        %s295 = smul.addr %s294, 32
        %s296 = scalar_lea.vmem [#allocation8], %s295
        %s297 = smul.u32 2, %s23
        %s298 = smul.u32 2, %s23
        %v300 = vld [vmem:[%s262] sm:$0xff]
        %v301 = vld [vmem:[%s262 + $0x8] sm:$0xff]
        %s302 = scalar_lea.vmem %s262, 16 [#allocation2]
        %v303 = vld [vmem:[%s302] sm:$0xff]
        %v304 = vld [vmem:[%s302 + $0x8] sm:$0xff]
        %v305 = vmul.f32 %v300, 0.5
        %v306 = vmul.f32 %v301, 0.5
        %v307 = vadd.f32 %v305, 0.0
        %v308 = vadd.f32 %v306, 0.0
        %vm309 = vcmp.ge.f32.partialorder %v307, 1.0
        %vm310 = vcmp.ge.f32.partialorder %v308, 1.0
        %v311 = vsel %vm309, 1, 0
        %v312 = vsel %vm310, 1, 0
        %v313 = vcvt.s32.f32 %v311
        %v314 = vcvt.s32.f32 %v312
        %v315 = vpack.c.bf16 %v314, %v313
        %v316 = vsel %vm309, 0.0, %v307
        %v317 = vsel %vm310, 0.0, %v308
        %v318 = vsub.f32 %v303, %v316
        %v319 = vsub.f32 %v304, %v317
        %v320 = vmul.f32 %v318, 0.5
        %v321 = vmul.f32 %v319, 0.5
        %v322 = vadd.f32 %v316, %v320
        %v323 = vadd.f32 %v317, %v321
        %vm324 = vcmp.ge.f32.partialorder %v322, 1.0
        %vm325 = vcmp.ge.f32.partialorder %v323, 1.0
        %v326 = vsel %vm324, 1, 0
        %v327 = vsel %vm325, 1, 0
        %v328 = vcvt.s32.f32 %v326
        %v329 = vcvt.s32.f32 %v327
        %v330 = vpack.c.bf16 %v329, %v328
        %v331 = vld [vmem:[#allocation5] sm:$0xf]
        %v332 = vld [vmem:[#allocation5 + $0x4] sm:$0xf]
        %v333 = vld [vmem:[#allocation5 + $0x8] sm:$0xf]
        %v334 = vld [vmem:[#allocation5 + $0xc] sm:$0xf]
        %v335 = vld [vmem:[%s2] sm:$0x1]
        %v337 = vlaneseq
        %v338 = vshrl.u32 %v337, 7
        %v339 = vsub.s32 0, %v338
        %v340 = vrot.slane %v335, %v339
        %v346 = vunpack.c.l.b16 %v331
        %v347 = vunpack.c.l.b16 %v332
        %v348 = vunpack.c.l.b16 %v333
        %v349 = vunpack.c.l.b16 %v334
        %v350 = vpack.c.b16 %v347, %v346
        %v351 = vpack.c.b16 %v349, %v348
        %vm354 = vcmask 261120
        %v356 = vsel %vm354, %v315, 0
        %v359 = vsel %vm354, %v330, 0
        %361 = vmatprep.subr.bf16.mxu0 0
        %362 = vmatpush1.bf16.msra.mxu0 %v350
        %363 = vmatprep.subr.bf16.mxu0 0
        %364 = vmatpush1.bf16.msra.mxu0 %v351
        %365 = vmatprep.subr.bf16.mxu0 0
        %366 = vmatpush1.bf16.msra.mxu0 0
        %367 = vmatprep.subr.bf16.mxu0 0
        %368 = vmatpush1.bf16.msra.mxu0 0
        %369 = vmatprep.subr.bf16.mxu0 0
        %370 = vmatpush1.bf16.msra.mxu0 0
        %371 = vmatprep.subr.bf16.mxu0 0
        %372 = vmatpush1.bf16.msra.mxu0 0
        %373 = vmatprep.subr.bf16.mxu0 0
        %374 = vmatpush1.bf16.msra.mxu0 0
        %375 = vmatprep.subr.bf16.mxu0 0
        %376 = vmatpush1.bf16.msra.mxu0 0
        %377 = vmatprep.subr.bf16.mxu0 0
        %378 = vmatpush1.bf16.msra.mxu0 0
        %379 = vmatprep.subr.bf16.mxu0 0
        %380 = vmatpush1.bf16.msra.mxu0 0
        %381 = vmatprep.subr.bf16.mxu0 0
        %382 = vmatpush1.bf16.msra.mxu0 0
        %383 = vmatprep.subr.bf16.mxu0 0
        %384 = vmatpush1.bf16.msra.mxu0 0
        %385 = vmatprep.subr.bf16.mxu0 0
        %386 = vmatpush1.bf16.msra.mxu0 0
        %387 = vmatprep.subr.bf16.mxu0 0
        %388 = vmatpush1.bf16.msra.mxu0 0
        %389 = vmatprep.subr.bf16.mxu0 0
        %390 = vmatpush1.bf16.msra.mxu0 0
        %391 = vmatprep.subr.bf16.mxu0 0
        %392 = vmatpush1.bf16.msra.mxu0 0
        %393 = vmatprep.mubr.bf16.mxu0 0
        %394 = vmatmul.mubr.bf16.gmra.mrb[0].mxu0 %v356
        %v395 = vpop.f32.mrb[0].mxu0
        %v396 = vadd.f32 %v340, %v395
        %v397 = vpop.f32.mrb[0].mxu0
        %v398 = vpop.f32.mrb[0].mxu0
        %v399 = vadd.f32 %v340, %v398
        %v400 = vpop.f32.mrb[0].mxu0
        %401 = vmatprep.mubr.bf16.mxu0 0
        %402 = vmatmul.mubr.bf16.gmra.mrb[0].mxu0 %v359
        %v403 = vpop.f32.mrb[0].mxu0
        %v404 = vadd.f32 %v340, %v403
        %v405 = vpop.f32.mrb[0].mxu0
        %v406 = vpop.f32.mrb[0].mxu0
        %v407 = vadd.f32 %v340, %v406
        %v408 = vpop.f32.mrb[0].mxu0
        %409 = vdwg.mxu0
        %v410 = vmul.f32 %v396, 0.5
        %v411 = vmul.f32 %v399, 0.5
        %v412 = vadd.f32 %v410, 0.0
        %v413 = vadd.f32 %v411, 0.0
        %vm414 = vcmp.ge.f32.partialorder %v412, 1.0
        %vm415 = vcmp.ge.f32.partialorder %v413, 1.0
        %v416 = vsel %vm414, 1, 0
        %v417 = vsel %vm415, 1, 0
        %v418 = vcvt.s32.f32 %v416
        %v419 = vcvt.s32.f32 %v417
        %v420 = vpack.c.bf16 %v419, %v418
        %v421 = vsel %vm414, 0.0, %v412
        %v422 = vsel %vm415, 0.0, %v413
        %v423 = vsub.f32 %v404, %v421
        %v424 = vsub.f32 %v407, %v422
        %v425 = vmul.f32 %v423, 0.5
        %v426 = vmul.f32 %v424, 0.5
        %v427 = vadd.f32 %v421, %v425
        %v428 = vadd.f32 %v422, %v426
        %vm429 = vcmp.ge.f32.partialorder %v427, 1.0
        %vm430 = vcmp.ge.f32.partialorder %v428, 1.0
        %v431 = vsel %vm429, 1, 0
        %v432 = vsel %vm430, 1, 0
        %v433 = vcvt.s32.f32 %v431
        %v434 = vcvt.s32.f32 %v432
        %v435 = vpack.c.bf16 %v434, %v433
        %437 = vrot.lane.b32.xlu0 %v420, 96
        %v438 = vpop.permute.xlu0 %437
        %vm439 = vcmask 64512
        %v441 = vsel %vm439, %v420, 0
        %v444 = vsel %vm439, %v438, 0
        %446 = vmatprep.subr.bf16.mxu0 0
        %447 = vmatpush1.bf16.xpose.msra.mxu0 %v444
        %448 = vmatprep.subr.bf16.mxu0 0
        %449 = vmatpush1.bf16.xpose.msra.mxu0 0
        %450 = vmatprep.subr.bf16.mxu0 0
        %451 = vmatpush1.bf16.xpose.msra.mxu0 0
        %452 = vmatprep.subr.bf16.mxu0 0
        %453 = vmatpush1.bf16.xpose.msra.mxu0 0
        %454 = vmatprep.subr.bf16.mxu0 0
        %455 = vmatpush1.bf16.xpose.msra.mxu0 0
        %456 = vmatprep.subr.bf16.mxu0 0
        %457 = vmatpush1.bf16.xpose.msra.mxu0 0
        %458 = vmatprep.subr.bf16.mxu0 0
        %459 = vmatpush1.bf16.xpose.msra.mxu0 0
        %460 = vmatprep.subr.bf16.mxu0 0
        %461 = vmatpush1.bf16.xpose.msra.mxu0 0
        %462 = vmatprep.subr.bf16.mxu0 0
        %463 = vmatpush1.bf16.xpose.msra.mxu0 0
        %464 = vmatprep.subr.bf16.mxu0 0
        %465 = vmatpush1.bf16.xpose.msra.mxu0 0
        %466 = vmatprep.subr.bf16.mxu0 0
        %467 = vmatpush1.bf16.xpose.msra.mxu0 0
        %468 = vmatprep.subr.bf16.mxu0 0
        %469 = vmatpush1.bf16.xpose.msra.mxu0 0
        %470 = vmatprep.subr.bf16.mxu0 0
        %471 = vmatpush1.bf16.xpose.msra.mxu0 0
        %472 = vmatprep.subr.bf16.mxu0 0
        %473 = vmatpush1.bf16.xpose.msra.mxu0 0
        %474 = vmatprep.subr.bf16.mxu0 0
        %475 = vmatpush1.bf16.xpose.msra.mxu0 0
        %476 = vmatprep.subr.bf16.mxu0 0
        %477 = vmatpush1.bf16.xpose.msra.mxu0 0
        %478 = vmatprep.mubr.bf16.mxu0 0
        %479 = vmatmul.mubr.bf16.gmra.mrb[0].mxu0 %v441
        %v480 = vpop.f32.mrb[0].mxu0
        %v481 = vadd.f32 0.0, %v480
        %v482 = vpop.f32.mrb[0].mxu0
        %v483 = vpop.f32.mrb[0].mxu0
        %v484 = vadd.f32 0.0, %v483
        %v485 = vpop.f32.mrb[0].mxu0
        %486 = vdwg.mxu0
        %488 = vrot.lane.b32.xlu0 %v435, 96
        %v489 = vpop.permute.xlu0 %488
        %v491 = vsel %vm439, %v435, 0
        %v494 = vsel %vm439, %v489, 0
        %496 = vmatprep.subr.bf16.mxu0 0
        %497 = vmatpush1.bf16.xpose.msra.mxu0 %v494
        %498 = vmatprep.subr.bf16.mxu0 0
        %499 = vmatpush1.bf16.xpose.msra.mxu0 0
        %500 = vmatprep.subr.bf16.mxu0 0
        %501 = vmatpush1.bf16.xpose.msra.mxu0 0
        %502 = vmatprep.subr.bf16.mxu0 0
        %503 = vmatpush1.bf16.xpose.msra.mxu0 0
        %504 = vmatprep.subr.bf16.mxu0 0
        %505 = vmatpush1.bf16.xpose.msra.mxu0 0
        %506 = vmatprep.subr.bf16.mxu0 0
        %507 = vmatpush1.bf16.xpose.msra.mxu0 0
        %508 = vmatprep.subr.bf16.mxu0 0
        %509 = vmatpush1.bf16.xpose.msra.mxu0 0
        %510 = vmatprep.subr.bf16.mxu0 0
        %511 = vmatpush1.bf16.xpose.msra.mxu0 0
        %512 = vmatprep.subr.bf16.mxu0 0
        %513 = vmatpush1.bf16.xpose.msra.mxu0 0
        %514 = vmatprep.subr.bf16.mxu0 0
        %515 = vmatpush1.bf16.xpose.msra.mxu0 0
        %516 = vmatprep.subr.bf16.mxu0 0
        %517 = vmatpush1.bf16.xpose.msra.mxu0 0
        %518 = vmatprep.subr.bf16.mxu0 0
        %519 = vmatpush1.bf16.xpose.msra.mxu0 0
        %520 = vmatprep.subr.bf16.mxu0 0
        %521 = vmatpush1.bf16.xpose.msra.mxu0 0
        %522 = vmatprep.subr.bf16.mxu0 0
        %523 = vmatpush1.bf16.xpose.msra.mxu0 0
        %524 = vmatprep.subr.bf16.mxu0 0
        %525 = vmatpush1.bf16.xpose.msra.mxu0 0
        %526 = vmatprep.subr.bf16.mxu0 0
        %527 = vmatpush1.bf16.xpose.msra.mxu0 0
        %528 = vmatprep.mubr.bf16.mxu0 0
        %529 = vmatmul.mubr.bf16.gmra.mrb[0].mxu0 %v491
        %v530 = vpop.f32.mrb[0].mxu0
        %v531 = vadd.f32 0.0, %v530
        %v532 = vpop.f32.mrb[0].mxu0
        %v533 = vpop.f32.mrb[0].mxu0
        %v534 = vadd.f32 0.0, %v533
        %v535 = vpop.f32.mrb[0].mxu0
        %536 = vdwg.mxu0
        %v537 = vpack.c.bf16 %v484, %v481
        %v538 = vpack.c.bf16 %v534, %v531
        %539 = vrot.lane.b32.xlu0 %v420, 64
        %v540 = vpop.permute.xlu0 %539
        %vm542 = vcmask 130048
        %v544 = vsel %vm542, %v537, 0
        %546 = vmatprep.subr.bf16.mxu0 0
        %547 = vmatpush1.bf16.msra.mxu0 %v540
        %548 = vmatprep.subr.bf16.mxu0 0
        %549 = vmatpush1.bf16.msra.mxu0 0
        %550 = vmatprep.subr.bf16.mxu0 0
        %551 = vmatpush1.bf16.msra.mxu0 0
        %552 = vmatprep.subr.bf16.mxu0 0
        %553 = vmatpush1.bf16.msra.mxu0 0
        %554 = vmatprep.subr.bf16.mxu0 0
        %555 = vmatpush1.bf16.msra.mxu0 0
        %556 = vmatprep.subr.bf16.mxu0 0
        %557 = vmatpush1.bf16.msra.mxu0 0
        %558 = vmatprep.subr.bf16.mxu0 0
        %559 = vmatpush1.bf16.msra.mxu0 0
        %560 = vmatprep.subr.bf16.mxu0 0
        %561 = vmatpush1.bf16.msra.mxu0 0
        %562 = vmatprep.subr.bf16.mxu0 0
        %563 = vmatpush1.bf16.msra.mxu0 0
        %564 = vmatprep.subr.bf16.mxu0 0
        %565 = vmatpush1.bf16.msra.mxu0 0
        %566 = vmatprep.subr.bf16.mxu0 0
        %567 = vmatpush1.bf16.msra.mxu0 0
        %568 = vmatprep.subr.bf16.mxu0 0
        %569 = vmatpush1.bf16.msra.mxu0 0
        %570 = vmatprep.subr.bf16.mxu0 0
        %571 = vmatpush1.bf16.msra.mxu0 0
        %572 = vmatprep.subr.bf16.mxu0 0
        %573 = vmatpush1.bf16.msra.mxu0 0
        %574 = vmatprep.subr.bf16.mxu0 0
        %575 = vmatpush1.bf16.msra.mxu0 0
        %576 = vmatprep.subr.bf16.mxu0 0
        %577 = vmatpush1.bf16.msra.mxu0 0
        %578 = vmatprep.mubr.bf16.mxu0 0
        %579 = vmatmul.mubr.bf16.gmra.mrb[0].mxu0 %v544
        %v580 = vpop.f32.mrb[0].mxu0
        %v581 = vadd.f32 0.0, %v580
        %v582 = vpop.f32.mrb[0].mxu0
        %v583 = vpop.f32.mrb[0].mxu0
        %v584 = vadd.f32 0.0, %v583
        %v585 = vpop.f32.mrb[0].mxu0
        %586 = vdwg.mxu0
        %587 = vrot.lane.b32.xlu0 %v435, 64
        %v588 = vpop.permute.xlu0 %587
        %v591 = vsel %vm542, %v538, 0
        %593 = vmatprep.subr.bf16.mxu0 0
        %594 = vmatpush1.bf16.msra.mxu0 %v588
        %595 = vmatprep.subr.bf16.mxu0 0
        %596 = vmatpush1.bf16.msra.mxu0 0
        %597 = vmatprep.subr.bf16.mxu0 0
        %598 = vmatpush1.bf16.msra.mxu0 0
        %599 = vmatprep.subr.bf16.mxu0 0
        %600 = vmatpush1.bf16.msra.mxu0 0
        %601 = vmatprep.subr.bf16.mxu0 0
        %602 = vmatpush1.bf16.msra.mxu0 0
        %603 = vmatprep.subr.bf16.mxu0 0
        %604 = vmatpush1.bf16.msra.mxu0 0
        %605 = vmatprep.subr.bf16.mxu0 0
        %606 = vmatpush1.bf16.msra.mxu0 0
        %607 = vmatprep.subr.bf16.mxu0 0
        %608 = vmatpush1.bf16.msra.mxu0 0
        %609 = vmatprep.subr.bf16.mxu0 0
        %610 = vmatpush1.bf16.msra.mxu0 0
        %611 = vmatprep.subr.bf16.mxu0 0
        %612 = vmatpush1.bf16.msra.mxu0 0
        %613 = vmatprep.subr.bf16.mxu0 0
        %614 = vmatpush1.bf16.msra.mxu0 0
        %615 = vmatprep.subr.bf16.mxu0 0
        %616 = vmatpush1.bf16.msra.mxu0 0
        %617 = vmatprep.subr.bf16.mxu0 0
        %618 = vmatpush1.bf16.msra.mxu0 0
        %619 = vmatprep.subr.bf16.mxu0 0
        %620 = vmatpush1.bf16.msra.mxu0 0
        %621 = vmatprep.subr.bf16.mxu0 0
        %622 = vmatpush1.bf16.msra.mxu0 0
        %623 = vmatprep.subr.bf16.mxu0 0
        %624 = vmatpush1.bf16.msra.mxu0 0
        %625 = vmatprep.mubr.bf16.mxu0 0
        %626 = vmatmul.mubr.bf16.gmra.mrb[0].mxu0 %v591
        %v627 = vpop.f32.mrb[0].mxu0
        %v628 = vadd.f32 0.0, %v627
        %v629 = vpop.f32.mrb[0].mxu0
        %v630 = vpop.f32.mrb[0].mxu0
        %v631 = vadd.f32 0.0, %v630
        %v632 = vpop.f32.mrb[0].mxu0
        %633 = vdwg.mxu0
        %634 = vrot.lane.b32.xlu0 %v420, 120
        %v635 = vpop.permute.xlu0 %634
        %636 = vrot.lane.b32.xlu0 %v420, 88
        %v637 = vpop.permute.xlu0 %636
        %v639 = vsel %vm439, %v635, 0
        %v642 = vsel %vm439, %v637, 0
        %644 = vmatprep.subr.bf16.mxu0 0
        %645 = vmatpush1.bf16.xpose.msra.mxu0 %v642
        %646 = vmatprep.subr.bf16.mxu0 0
        %647 = vmatpush1.bf16.xpose.msra.mxu0 0
        %648 = vmatprep.subr.bf16.mxu0 0
        %649 = vmatpush1.bf16.xpose.msra.mxu0 0
        %650 = vmatprep.subr.bf16.mxu0 0
        %651 = vmatpush1.bf16.xpose.msra.mxu0 0
        %652 = vmatprep.subr.bf16.mxu0 0
        %653 = vmatpush1.bf16.xpose.msra.mxu0 0
        %654 = vmatprep.subr.bf16.mxu0 0
        %655 = vmatpush1.bf16.xpose.msra.mxu0 0
        %656 = vmatprep.subr.bf16.mxu0 0
        %657 = vmatpush1.bf16.xpose.msra.mxu0 0
        %658 = vmatprep.subr.bf16.mxu0 0
        %659 = vmatpush1.bf16.xpose.msra.mxu0 0
        %660 = vmatprep.subr.bf16.mxu0 0
        %661 = vmatpush1.bf16.xpose.msra.mxu0 0
        %662 = vmatprep.subr.bf16.mxu0 0
        %663 = vmatpush1.bf16.xpose.msra.mxu0 0
        %664 = vmatprep.subr.bf16.mxu0 0
        %665 = vmatpush1.bf16.xpose.msra.mxu0 0
        %666 = vmatprep.subr.bf16.mxu0 0
        %667 = vmatpush1.bf16.xpose.msra.mxu0 0
        %668 = vmatprep.subr.bf16.mxu0 0
        %669 = vmatpush1.bf16.xpose.msra.mxu0 0
        %670 = vmatprep.subr.bf16.mxu0 0
        %671 = vmatpush1.bf16.xpose.msra.mxu0 0
        %672 = vmatprep.subr.bf16.mxu0 0
        %673 = vmatpush1.bf16.xpose.msra.mxu0 0
        %674 = vmatprep.subr.bf16.mxu0 0
        %675 = vmatpush1.bf16.xpose.msra.mxu0 0
        %676 = vmatprep.mubr.bf16.mxu0 0
        %677 = vmatmul.mubr.bf16.gmra.mrb[0].mxu0 %v639
        %v678 = vpop.f32.mrb[0].mxu0
        %v679 = vadd.f32 0.0, %v678
        %v680 = vpop.f32.mrb[0].mxu0
        %v681 = vpop.f32.mrb[0].mxu0
        %v682 = vadd.f32 0.0, %v681
        %v683 = vpop.f32.mrb[0].mxu0
        %684 = vdwg.mxu0
        %685 = vrot.lane.b32.xlu0 %v435, 120
        %v686 = vpop.permute.xlu0 %685
        %687 = vrot.lane.b32.xlu0 %v435, 88
        %v688 = vpop.permute.xlu0 %687
        %v690 = vsel %vm439, %v686, 0
        %v693 = vsel %vm439, %v688, 0
        %695 = vmatprep.subr.bf16.mxu0 0
        %696 = vmatpush1.bf16.xpose.msra.mxu0 %v693
        %697 = vmatprep.subr.bf16.mxu0 0
        %698 = vmatpush1.bf16.xpose.msra.mxu0 0
        %699 = vmatprep.subr.bf16.mxu0 0
        %700 = vmatpush1.bf16.xpose.msra.mxu0 0
        %701 = vmatprep.subr.bf16.mxu0 0
        %702 = vmatpush1.bf16.xpose.msra.mxu0 0
        %703 = vmatprep.subr.bf16.mxu0 0
        %704 = vmatpush1.bf16.xpose.msra.mxu0 0
        %705 = vmatprep.subr.bf16.mxu0 0
        %706 = vmatpush1.bf16.xpose.msra.mxu0 0
        %707 = vmatprep.subr.bf16.mxu0 0
        %708 = vmatpush1.bf16.xpose.msra.mxu0 0
        %709 = vmatprep.subr.bf16.mxu0 0
        %710 = vmatpush1.bf16.xpose.msra.mxu0 0
        %711 = vmatprep.subr.bf16.mxu0 0
        %712 = vmatpush1.bf16.xpose.msra.mxu0 0
        %713 = vmatprep.subr.bf16.mxu0 0
        %714 = vmatpush1.bf16.xpose.msra.mxu0 0
        %715 = vmatprep.subr.bf16.mxu0 0
        %716 = vmatpush1.bf16.xpose.msra.mxu0 0
        %717 = vmatprep.subr.bf16.mxu0 0
        %718 = vmatpush1.bf16.xpose.msra.mxu0 0
        %719 = vmatprep.subr.bf16.mxu0 0
        %720 = vmatpush1.bf16.xpose.msra.mxu0 0
        %721 = vmatprep.subr.bf16.mxu0 0
        %722 = vmatpush1.bf16.xpose.msra.mxu0 0
        %723 = vmatprep.subr.bf16.mxu0 0
        %724 = vmatpush1.bf16.xpose.msra.mxu0 0
        %725 = vmatprep.subr.bf16.mxu0 0
        %726 = vmatpush1.bf16.xpose.msra.mxu0 0
        %727 = vmatprep.mubr.bf16.mxu0 0
        %728 = vmatmul.mubr.bf16.gmra.mrb[0].mxu0 %v690
        %v729 = vpop.f32.mrb[0].mxu0
        %v730 = vadd.f32 0.0, %v729
        %v731 = vpop.f32.mrb[0].mxu0
        %v732 = vpop.f32.mrb[0].mxu0
        %v733 = vadd.f32 0.0, %v732
        %v734 = vpop.f32.mrb[0].mxu0
        %735 = vdwg.mxu0
        %v736 = vpack.c.bf16 %v682, %v679
        %v737 = vpack.c.bf16 %v733, %v730
        %738 = vrot.lane.b32.xlu0 %v420, 56
        %v739 = vpop.permute.xlu0 %738
        %v742 = vsel %vm542, %v736, 0
        %744 = vmatprep.subr.bf16.mxu0 0
        %745 = vmatpush1.bf16.msra.mxu0 %v739
        %746 = vmatprep.subr.bf16.mxu0 0
        %747 = vmatpush1.bf16.msra.mxu0 0
        %748 = vmatprep.subr.bf16.mxu0 0
        %749 = vmatpush1.bf16.msra.mxu0 0
        %750 = vmatprep.subr.bf16.mxu0 0
        %751 = vmatpush1.bf16.msra.mxu0 0
        %752 = vmatprep.subr.bf16.mxu0 0
        %753 = vmatpush1.bf16.msra.mxu0 0
        %754 = vmatprep.subr.bf16.mxu0 0
        %755 = vmatpush1.bf16.msra.mxu0 0
        %756 = vmatprep.subr.bf16.mxu0 0
        %757 = vmatpush1.bf16.msra.mxu0 0
        %758 = vmatprep.subr.bf16.mxu0 0
        %759 = vmatpush1.bf16.msra.mxu0 0
        %760 = vmatprep.subr.bf16.mxu0 0
        %761 = vmatpush1.bf16.msra.mxu0 0
        %762 = vmatprep.subr.bf16.mxu0 0
        %763 = vmatpush1.bf16.msra.mxu0 0
        %764 = vmatprep.subr.bf16.mxu0 0
        %765 = vmatpush1.bf16.msra.mxu0 0
        %766 = vmatprep.subr.bf16.mxu0 0
        %767 = vmatpush1.bf16.msra.mxu0 0
        %768 = vmatprep.subr.bf16.mxu0 0
        %769 = vmatpush1.bf16.msra.mxu0 0
        %770 = vmatprep.subr.bf16.mxu0 0
        %771 = vmatpush1.bf16.msra.mxu0 0
        %772 = vmatprep.subr.bf16.mxu0 0
        %773 = vmatpush1.bf16.msra.mxu0 0
        %774 = vmatprep.subr.bf16.mxu0 0
        %775 = vmatpush1.bf16.msra.mxu0 0
        %776 = vmatprep.mubr.bf16.mxu0 0
        %777 = vmatmul.mubr.bf16.gmra.mrb[0].mxu0 %v742
        %v778 = vpop.f32.mrb[0].mxu0
        %v779 = vadd.f32 0.0, %v778
        %v780 = vpop.f32.mrb[0].mxu0
        %v781 = vpop.f32.mrb[0].mxu0
        %v782 = vadd.f32 0.0, %v781
        %v783 = vpop.f32.mrb[0].mxu0
        %784 = vdwg.mxu0
        %785 = vrot.lane.b32.xlu0 %v435, 56
        %v786 = vpop.permute.xlu0 %785
        %v789 = vsel %vm542, %v737, 0
        %791 = vmatprep.subr.bf16.mxu0 0
        %792 = vmatpush1.bf16.msra.mxu0 %v786
        %793 = vmatprep.subr.bf16.mxu0 0
        %794 = vmatpush1.bf16.msra.mxu0 0
        %795 = vmatprep.subr.bf16.mxu0 0
        %796 = vmatpush1.bf16.msra.mxu0 0
        %797 = vmatprep.subr.bf16.mxu0 0
        %798 = vmatpush1.bf16.msra.mxu0 0
        %799 = vmatprep.subr.bf16.mxu0 0
        %800 = vmatpush1.bf16.msra.mxu0 0
        %801 = vmatprep.subr.bf16.mxu0 0
        %802 = vmatpush1.bf16.msra.mxu0 0
        %803 = vmatprep.subr.bf16.mxu0 0
        %804 = vmatpush1.bf16.msra.mxu0 0
        %805 = vmatprep.subr.bf16.mxu0 0
        %806 = vmatpush1.bf16.msra.mxu0 0
        %807 = vmatprep.subr.bf16.mxu0 0
        %808 = vmatpush1.bf16.msra.mxu0 0
        %809 = vmatprep.subr.bf16.mxu0 0
        %810 = vmatpush1.bf16.msra.mxu0 0
        %811 = vmatprep.subr.bf16.mxu0 0
        %812 = vmatpush1.bf16.msra.mxu0 0
        %813 = vmatprep.subr.bf16.mxu0 0
        %814 = vmatpush1.bf16.msra.mxu0 0
        %815 = vmatprep.subr.bf16.mxu0 0
        %816 = vmatpush1.bf16.msra.mxu0 0
        %817 = vmatprep.subr.bf16.mxu0 0
        %818 = vmatpush1.bf16.msra.mxu0 0
        %819 = vmatprep.subr.bf16.mxu0 0
        %820 = vmatpush1.bf16.msra.mxu0 0
        %821 = vmatprep.subr.bf16.mxu0 0
        %822 = vmatpush1.bf16.msra.mxu0 0
        %823 = vmatprep.mubr.bf16.mxu0 0
        %824 = vmatmul.mubr.bf16.gmra.mrb[0].mxu0 %v789
        %v825 = vpop.f32.mrb[0].mxu0
        %v826 = vadd.f32 0.0, %v825
        %v827 = vpop.f32.mrb[0].mxu0
        %v828 = vpop.f32.mrb[0].mxu0
        %v829 = vadd.f32 0.0, %v828
        %v830 = vpop.f32.mrb[0].mxu0
        %831 = vdwg.mxu0
        %832 = vrot.lane.b32.xlu0 %v420, 112
        %v833 = vpop.permute.xlu0 %832
        %834 = vrot.lane.b32.xlu0 %v420, 80
        %v835 = vpop.permute.xlu0 %834
        %v837 = vsel %vm439, %v833, 0
        %v840 = vsel %vm439, %v835, 0
        %842 = vmatprep.subr.bf16.mxu0 0
        %843 = vmatpush1.bf16.xpose.msra.mxu0 %v840
        %844 = vmatprep.subr.bf16.mxu0 0
        %845 = vmatpush1.bf16.xpose.msra.mxu0 0
        %846 = vmatprep.subr.bf16.mxu0 0
        %847 = vmatpush1.bf16.xpose.msra.mxu0 0
        %848 = vmatprep.subr.bf16.mxu0 0
        %849 = vmatpush1.bf16.xpose.msra.mxu0 0
        %850 = vmatprep.subr.bf16.mxu0 0
        %851 = vmatpush1.bf16.xpose.msra.mxu0 0
        %852 = vmatprep.subr.bf16.mxu0 0
        %853 = vmatpush1.bf16.xpose.msra.mxu0 0
        %854 = vmatprep.subr.bf16.mxu0 0
        %855 = vmatpush1.bf16.xpose.msra.mxu0 0
        %856 = vmatprep.subr.bf16.mxu0 0
        %857 = vmatpush1.bf16.xpose.msra.mxu0 0
        %858 = vmatprep.subr.bf16.mxu0 0
        %859 = vmatpush1.bf16.xpose.msra.mxu0 0
        %860 = vmatprep.subr.bf16.mxu0 0
        %861 = vmatpush1.bf16.xpose.msra.mxu0 0
        %862 = vmatprep.subr.bf16.mxu0 0
        %863 = vmatpush1.bf16.xpose.msra.mxu0 0
        %864 = vmatprep.subr.bf16.mxu0 0
        %865 = vmatpush1.bf16.xpose.msra.mxu0 0
        %866 = vmatprep.subr.bf16.mxu0 0
        %867 = vmatpush1.bf16.xpose.msra.mxu0 0
        %868 = vmatprep.subr.bf16.mxu0 0
        %869 = vmatpush1.bf16.xpose.msra.mxu0 0
        %870 = vmatprep.subr.bf16.mxu0 0
        %871 = vmatpush1.bf16.xpose.msra.mxu0 0
        %872 = vmatprep.subr.bf16.mxu0 0
        %873 = vmatpush1.bf16.xpose.msra.mxu0 0
        %874 = vmatprep.mubr.bf16.mxu0 0
        %875 = vmatmul.mubr.bf16.gmra.mrb[0].mxu0 %v837
        %v876 = vpop.f32.mrb[0].mxu0
        %v877 = vadd.f32 0.0, %v876
        %v878 = vpop.f32.mrb[0].mxu0
        %v879 = vpop.f32.mrb[0].mxu0
        %v880 = vadd.f32 0.0, %v879
        %v881 = vpop.f32.mrb[0].mxu0
        %882 = vdwg.mxu0
        %883 = vrot.lane.b32.xlu0 %v435, 112
        %v884 = vpop.permute.xlu0 %883
        %885 = vrot.lane.b32.xlu0 %v435, 80
        %v886 = vpop.permute.xlu0 %885
        %v888 = vsel %vm439, %v884, 0
        %v891 = vsel %vm439, %v886, 0
        %893 = vmatprep.subr.bf16.mxu0 0
        %894 = vmatpush1.bf16.xpose.msra.mxu0 %v891
        %895 = vmatprep.subr.bf16.mxu0 0
        %896 = vmatpush1.bf16.xpose.msra.mxu0 0
        %897 = vmatprep.subr.bf16.mxu0 0
        %898 = vmatpush1.bf16.xpose.msra.mxu0 0
        %899 = vmatprep.subr.bf16.mxu0 0
        %900 = vmatpush1.bf16.xpose.msra.mxu0 0
        %901 = vmatprep.subr.bf16.mxu0 0
        %902 = vmatpush1.bf16.xpose.msra.mxu0 0
        %903 = vmatprep.subr.bf16.mxu0 0
        %904 = vmatpush1.bf16.xpose.msra.mxu0 0
        %905 = vmatprep.subr.bf16.mxu0 0
        %906 = vmatpush1.bf16.xpose.msra.mxu0 0
        %907 = vmatprep.subr.bf16.mxu0 0
        %908 = vmatpush1.bf16.xpose.msra.mxu0 0
        %909 = vmatprep.subr.bf16.mxu0 0
        %910 = vmatpush1.bf16.xpose.msra.mxu0 0
        %911 = vmatprep.subr.bf16.mxu0 0
        %912 = vmatpush1.bf16.xpose.msra.mxu0 0
        %913 = vmatprep.subr.bf16.mxu0 0
        %914 = vmatpush1.bf16.xpose.msra.mxu0 0
        %915 = vmatprep.subr.bf16.mxu0 0
        %916 = vmatpush1.bf16.xpose.msra.mxu0 0
        %917 = vmatprep.subr.bf16.mxu0 0
        %918 = vmatpush1.bf16.xpose.msra.mxu0 0
        %919 = vmatprep.subr.bf16.mxu0 0
        %920 = vmatpush1.bf16.xpose.msra.mxu0 0
        %921 = vmatprep.subr.bf16.mxu0 0
        %922 = vmatpush1.bf16.xpose.msra.mxu0 0
        %923 = vmatprep.subr.bf16.mxu0 0
        %924 = vmatpush1.bf16.xpose.msra.mxu0 0
        %925 = vmatprep.mubr.bf16.mxu0 0
        %926 = vmatmul.mubr.bf16.gmra.mrb[0].mxu0 %v888
        %v927 = vpop.f32.mrb[0].mxu0
        %v928 = vadd.f32 0.0, %v927
        %v929 = vpop.f32.mrb[0].mxu0
        %v930 = vpop.f32.mrb[0].mxu0
        %v931 = vadd.f32 0.0, %v930
        %v932 = vpop.f32.mrb[0].mxu0
        %933 = vdwg.mxu0
        %v934 = vpack.c.bf16 %v880, %v877
        %v935 = vpack.c.bf16 %v931, %v928
        %936 = vrot.lane.b32.xlu0 %v420, 48
        %v937 = vpop.permute.xlu0 %936
        %v940 = vsel %vm542, %v934, 0
        %942 = vmatprep.subr.bf16.mxu0 0
        %943 = vmatpush1.bf16.msra.mxu0 %v937
        %944 = vmatprep.subr.bf16.mxu0 0
        %945 = vmatpush1.bf16.msra.mxu0 0
        %946 = vmatprep.subr.bf16.mxu0 0
        %947 = vmatpush1.bf16.msra.mxu0 0
        %948 = vmatprep.subr.bf16.mxu0 0
        %949 = vmatpush1.bf16.msra.mxu0 0
        %950 = vmatprep.subr.bf16.mxu0 0
        %951 = vmatpush1.bf16.msra.mxu0 0
        %952 = vmatprep.subr.bf16.mxu0 0
        %953 = vmatpush1.bf16.msra.mxu0 0
        %954 = vmatprep.subr.bf16.mxu0 0
        %955 = vmatpush1.bf16.msra.mxu0 0
        %956 = vmatprep.subr.bf16.mxu0 0
        %957 = vmatpush1.bf16.msra.mxu0 0
        %958 = vmatprep.subr.bf16.mxu0 0
        %959 = vmatpush1.bf16.msra.mxu0 0
        %960 = vmatprep.subr.bf16.mxu0 0
        %961 = vmatpush1.bf16.msra.mxu0 0
        %962 = vmatprep.subr.bf16.mxu0 0
        %963 = vmatpush1.bf16.msra.mxu0 0
        %964 = vmatprep.subr.bf16.mxu0 0
        %965 = vmatpush1.bf16.msra.mxu0 0
        %966 = vmatprep.subr.bf16.mxu0 0
        %967 = vmatpush1.bf16.msra.mxu0 0
        %968 = vmatprep.subr.bf16.mxu0 0
        %969 = vmatpush1.bf16.msra.mxu0 0
        %970 = vmatprep.subr.bf16.mxu0 0
        %971 = vmatpush1.bf16.msra.mxu0 0
        %972 = vmatprep.subr.bf16.mxu0 0
        %973 = vmatpush1.bf16.msra.mxu0 0
        %974 = vmatprep.mubr.bf16.mxu0 0
        %975 = vmatmul.mubr.bf16.gmra.mrb[0].mxu0 %v940
        %v976 = vpop.f32.mrb[0].mxu0
        %v977 = vadd.f32 0.0, %v976
        %v978 = vpop.f32.mrb[0].mxu0
        %v979 = vpop.f32.mrb[0].mxu0
        %v980 = vadd.f32 0.0, %v979
        %v981 = vpop.f32.mrb[0].mxu0
        %982 = vdwg.mxu0
        %983 = vrot.lane.b32.xlu0 %v435, 48
        %v984 = vpop.permute.xlu0 %983
        %v987 = vsel %vm542, %v935, 0
        %989 = vmatprep.subr.bf16.mxu0 0
        %990 = vmatpush1.bf16.msra.mxu0 %v984
        %991 = vmatprep.subr.bf16.mxu0 0
        %992 = vmatpush1.bf16.msra.mxu0 0
        %993 = vmatprep.subr.bf16.mxu0 0
        %994 = vmatpush1.bf16.msra.mxu0 0
        %995 = vmatprep.subr.bf16.mxu0 0
        %996 = vmatpush1.bf16.msra.mxu0 0
        %997 = vmatprep.subr.bf16.mxu0 0
        %998 = vmatpush1.bf16.msra.mxu0 0
        %999 = vmatprep.subr.bf16.mxu0 0
        %1000 = vmatpush1.bf16.msra.mxu0 0
        %1001 = vmatprep.subr.bf16.mxu0 0
        %1002 = vmatpush1.bf16.msra.mxu0 0
        %1003 = vmatprep.subr.bf16.mxu0 0
        %1004 = vmatpush1.bf16.msra.mxu0 0
        %1005 = vmatprep.subr.bf16.mxu0 0
        %1006 = vmatpush1.bf16.msra.mxu0 0
        %1007 = vmatprep.subr.bf16.mxu0 0
        %1008 = vmatpush1.bf16.msra.mxu0 0
        %1009 = vmatprep.subr.bf16.mxu0 0
        %1010 = vmatpush1.bf16.msra.mxu0 0
        %1011 = vmatprep.subr.bf16.mxu0 0
        %1012 = vmatpush1.bf16.msra.mxu0 0
        %1013 = vmatprep.subr.bf16.mxu0 0
        %1014 = vmatpush1.bf16.msra.mxu0 0
        %1015 = vmatprep.subr.bf16.mxu0 0
        %1016 = vmatpush1.bf16.msra.mxu0 0
        %1017 = vmatprep.subr.bf16.mxu0 0
        %1018 = vmatpush1.bf16.msra.mxu0 0
        %1019 = vmatprep.subr.bf16.mxu0 0
        %1020 = vmatpush1.bf16.msra.mxu0 0
        %1021 = vmatprep.mubr.bf16.mxu0 0
        %1022 = vmatmul.mubr.bf16.gmra.mrb[0].mxu0 %v987
        %v1023 = vpop.f32.mrb[0].mxu0
        %v1024 = vadd.f32 0.0, %v1023
        %v1025 = vpop.f32.mrb[0].mxu0
        %v1026 = vpop.f32.mrb[0].mxu0
        %v1027 = vadd.f32 0.0, %v1026
        %v1028 = vpop.f32.mrb[0].mxu0
        %1029 = vdwg.mxu0
        %1030 = vrot.lane.b32.xlu0 %v420, 104
        %v1031 = vpop.permute.xlu0 %1030
        %1032 = vrot.lane.b32.xlu0 %v420, 72
        %v1033 = vpop.permute.xlu0 %1032
        %v1035 = vsel %vm439, %v1031, 0
        %v1038 = vsel %vm439, %v1033, 0
        %1040 = vmatprep.subr.bf16.mxu0 0
        %1041 = vmatpush1.bf16.xpose.msra.mxu0 %v1038
        %1042 = vmatprep.subr.bf16.mxu0 0
        %1043 = vmatpush1.bf16.xpose.msra.mxu0 0
        %1044 = vmatprep.subr.bf16.mxu0 0
        %1045 = vmatpush1.bf16.xpose.msra.mxu0 0
        %1046 = vmatprep.subr.bf16.mxu0 0
        %1047 = vmatpush1.bf16.xpose.msra.mxu0 0
        %1048 = vmatprep.subr.bf16.mxu0 0
        %1049 = vmatpush1.bf16.xpose.msra.mxu0 0
        %1050 = vmatprep.subr.bf16.mxu0 0
        %1051 = vmatpush1.bf16.xpose.msra.mxu0 0
        %1052 = vmatprep.subr.bf16.mxu0 0
        %1053 = vmatpush1.bf16.xpose.msra.mxu0 0
        %1054 = vmatprep.subr.bf16.mxu0 0
        %1055 = vmatpush1.bf16.xpose.msra.mxu0 0
        %1056 = vmatprep.subr.bf16.mxu0 0
        %1057 = vmatpush1.bf16.xpose.msra.mxu0 0
        %1058 = vmatprep.subr.bf16.mxu0 0
        %1059 = vmatpush1.bf16.xpose.msra.mxu0 0
        %1060 = vmatprep.subr.bf16.mxu0 0
        %1061 = vmatpush1.bf16.xpose.msra.mxu0 0
        %1062 = vmatprep.subr.bf16.mxu0 0
        %1063 = vmatpush1.bf16.xpose.msra.mxu0 0
        %1064 = vmatprep.subr.bf16.mxu0 0
        %1065 = vmatpush1.bf16.xpose.msra.mxu0 0
        %1066 = vmatprep.subr.bf16.mxu0 0
        %1067 = vmatpush1.bf16.xpose.msra.mxu0 0
        %1068 = vmatprep.subr.bf16.mxu0 0
        %1069 = vmatpush1.bf16.xpose.msra.mxu0 0
        %1070 = vmatprep.subr.bf16.mxu0 0
        %1071 = vmatpush1.bf16.xpose.msra.mxu0 0
        %1072 = vmatprep.mubr.bf16.mxu0 0
        %1073 = vmatmul.mubr.bf16.gmra.mrb[0].mxu0 %v1035
        %v1074 = vpop.f32.mrb[0].mxu0
        %v1075 = vadd.f32 0.0, %v1074
        %v1076 = vpop.f32.mrb[0].mxu0
        %v1077 = vpop.f32.mrb[0].mxu0
        %v1078 = vadd.f32 0.0, %v1077
        %v1079 = vpop.f32.mrb[0].mxu0
        %1080 = vdwg.mxu0
        %1081 = vrot.lane.b32.xlu0 %v435, 104
        %v1082 = vpop.permute.xlu0 %1081
        %1083 = vrot.lane.b32.xlu0 %v435, 72
        %v1084 = vpop.permute.xlu0 %1083
        %v1086 = vsel %vm439, %v1082, 0
        %v1089 = vsel %vm439, %v1084, 0
        %1091 = vmatprep.subr.bf16.mxu0 0
        %1092 = vmatpush1.bf16.xpose.msra.mxu0 %v1089
        %1093 = vmatprep.subr.bf16.mxu0 0
        %1094 = vmatpush1.bf16.xpose.msra.mxu0 0
        %1095 = vmatprep.subr.bf16.mxu0 0
        %1096 = vmatpush1.bf16.xpose.msra.mxu0 0
        %1097 = vmatprep.subr.bf16.mxu0 0
        %1098 = vmatpush1.bf16.xpose.msra.mxu0 0
        %1099 = vmatprep.subr.bf16.mxu0 0
        %1100 = vmatpush1.bf16.xpose.msra.mxu0 0
        %1101 = vmatprep.subr.bf16.mxu0 0
        %1102 = vmatpush1.bf16.xpose.msra.mxu0 0
        %1103 = vmatprep.subr.bf16.mxu0 0
        %1104 = vmatpush1.bf16.xpose.msra.mxu0 0
        %1105 = vmatprep.subr.bf16.mxu0 0
        %1106 = vmatpush1.bf16.xpose.msra.mxu0 0
        %1107 = vmatprep.subr.bf16.mxu0 0
        %1108 = vmatpush1.bf16.xpose.msra.mxu0 0
        %1109 = vmatprep.subr.bf16.mxu0 0
        %1110 = vmatpush1.bf16.xpose.msra.mxu0 0
        %1111 = vmatprep.subr.bf16.mxu0 0
        %1112 = vmatpush1.bf16.xpose.msra.mxu0 0
        %1113 = vmatprep.subr.bf16.mxu0 0
        %1114 = vmatpush1.bf16.xpose.msra.mxu0 0
        %1115 = vmatprep.subr.bf16.mxu0 0
        %1116 = vmatpush1.bf16.xpose.msra.mxu0 0
        %1117 = vmatprep.subr.bf16.mxu0 0
        %1118 = vmatpush1.bf16.xpose.msra.mxu0 0
        %1119 = vmatprep.subr.bf16.mxu0 0
        %1120 = vmatpush1.bf16.xpose.msra.mxu0 0
        %1121 = vmatprep.subr.bf16.mxu0 0
        %1122 = vmatpush1.bf16.xpose.msra.mxu0 0
        %1123 = vmatprep.mubr.bf16.mxu0 0
        %1124 = vmatmul.mubr.bf16.gmra.mrb[0].mxu0 %v1086
        %v1125 = vpop.f32.mrb[0].mxu0
        %v1126 = vadd.f32 0.0, %v1125
        %v1127 = vpop.f32.mrb[0].mxu0
        %v1128 = vpop.f32.mrb[0].mxu0
        %v1129 = vadd.f32 0.0, %v1128
        %v1130 = vpop.f32.mrb[0].mxu0
        %1131 = vdwg.mxu0
        %v1132 = vpack.c.bf16 %v1078, %v1075
        %v1133 = vpack.c.bf16 %v1129, %v1126
        %1134 = vrot.lane.b32.xlu0 %v420, 40
        %v1135 = vpop.permute.xlu0 %1134
        %v1138 = vsel %vm542, %v1132, 0
        %1140 = vmatprep.subr.bf16.mxu0 0
        %1141 = vmatpush1.bf16.msra.mxu0 %v1135
        %1142 = vmatprep.subr.bf16.mxu0 0
        %1143 = vmatpush1.bf16.msra.mxu0 0
        %1144 = vmatprep.subr.bf16.mxu0 0
        %1145 = vmatpush1.bf16.msra.mxu0 0
        %1146 = vmatprep.subr.bf16.mxu0 0
        %1147 = vmatpush1.bf16.msra.mxu0 0
        %1148 = vmatprep.subr.bf16.mxu0 0
        %1149 = vmatpush1.bf16.msra.mxu0 0
        %1150 = vmatprep.subr.bf16.mxu0 0
        %1151 = vmatpush1.bf16.msra.mxu0 0
        %1152 = vmatprep.subr.bf16.mxu0 0
        %1153 = vmatpush1.bf16.msra.mxu0 0
        %1154 = vmatprep.subr.bf16.mxu0 0
        %1155 = vmatpush1.bf16.msra.mxu0 0
        %1156 = vmatprep.subr.bf16.mxu0 0
        %1157 = vmatpush1.bf16.msra.mxu0 0
        %1158 = vmatprep.subr.bf16.mxu0 0
        %1159 = vmatpush1.bf16.msra.mxu0 0
        %1160 = vmatprep.subr.bf16.mxu0 0
        %1161 = vmatpush1.bf16.msra.mxu0 0
        %1162 = vmatprep.subr.bf16.mxu0 0
        %1163 = vmatpush1.bf16.msra.mxu0 0
        %1164 = vmatprep.subr.bf16.mxu0 0
        %1165 = vmatpush1.bf16.msra.mxu0 0
        %1166 = vmatprep.subr.bf16.mxu0 0
        %1167 = vmatpush1.bf16.msra.mxu0 0
        %1168 = vmatprep.subr.bf16.mxu0 0
        %1169 = vmatpush1.bf16.msra.mxu0 0
        %1170 = vmatprep.subr.bf16.mxu0 0
        %1171 = vmatpush1.bf16.msra.mxu0 0
        %1172 = vmatprep.mubr.bf16.mxu0 0
        %1173 = vmatmul.mubr.bf16.gmra.mrb[0].mxu0 %v1138
        %v1174 = vpop.f32.mrb[0].mxu0
        %v1175 = vadd.f32 0.0, %v1174
        %v1176 = vpop.f32.mrb[0].mxu0
        %v1177 = vpop.f32.mrb[0].mxu0
        %v1178 = vadd.f32 0.0, %v1177
        %v1179 = vpop.f32.mrb[0].mxu0
        %1180 = vdwg.mxu0
        %1181 = vrot.lane.b32.xlu0 %v435, 40
        %v1182 = vpop.permute.xlu0 %1181
        %v1185 = vsel %vm542, %v1133, 0
        %1187 = vmatprep.subr.bf16.mxu0 0
        %1188 = vmatpush1.bf16.msra.mxu0 %v1182
        %1189 = vmatprep.subr.bf16.mxu0 0
        %1190 = vmatpush1.bf16.msra.mxu0 0
        %1191 = vmatprep.subr.bf16.mxu0 0
        %1192 = vmatpush1.bf16.msra.mxu0 0
        %1193 = vmatprep.subr.bf16.mxu0 0
        %1194 = vmatpush1.bf16.msra.mxu0 0
        %1195 = vmatprep.subr.bf16.mxu0 0
        %1196 = vmatpush1.bf16.msra.mxu0 0
        %1197 = vmatprep.subr.bf16.mxu0 0
        %1198 = vmatpush1.bf16.msra.mxu0 0
        %1199 = vmatprep.subr.bf16.mxu0 0
        %1200 = vmatpush1.bf16.msra.mxu0 0
        %1201 = vmatprep.subr.bf16.mxu0 0
        %1202 = vmatpush1.bf16.msra.mxu0 0
        %1203 = vmatprep.subr.bf16.mxu0 0
        %1204 = vmatpush1.bf16.msra.mxu0 0
        %1205 = vmatprep.subr.bf16.mxu0 0
        %1206 = vmatpush1.bf16.msra.mxu0 0
        %1207 = vmatprep.subr.bf16.mxu0 0
        %1208 = vmatpush1.bf16.msra.mxu0 0
        %1209 = vmatprep.subr.bf16.mxu0 0
        %1210 = vmatpush1.bf16.msra.mxu0 0
        %1211 = vmatprep.subr.bf16.mxu0 0
        %1212 = vmatpush1.bf16.msra.mxu0 0
        %1213 = vmatprep.subr.bf16.mxu0 0
        %1214 = vmatpush1.bf16.msra.mxu0 0
        %1215 = vmatprep.subr.bf16.mxu0 0
        %1216 = vmatpush1.bf16.msra.mxu0 0
        %1217 = vmatprep.subr.bf16.mxu0 0
        %1218 = vmatpush1.bf16.msra.mxu0 0
        %1219 = vmatprep.mubr.bf16.mxu0 0
        %1220 = vmatmul.mubr.bf16.gmra.mrb[0].mxu0 %v1185
        %v1221 = vpop.f32.mrb[0].mxu0
        %v1222 = vadd.f32 0.0, %v1221
        %v1223 = vpop.f32.mrb[0].mxu0
        %v1224 = vpop.f32.mrb[0].mxu0
        %v1225 = vadd.f32 0.0, %v1224
        %v1226 = vpop.f32.mrb[0].mxu0
        %1227 = vdwg.mxu0
        %1232 = vrot.lane.b32.xlu0 %v779, 8
        %v1233 = vpop.permute.xlu0 %1232
        %1234 = vrot.lane.b32.xlu0 %v782, 8
        %v1235 = vpop.permute.xlu0 %1234
        %1236 = vrot.lane.b32.xlu0 %v826, 8
        %v1237 = vpop.permute.xlu0 %1236
        %1238 = vrot.lane.b32.xlu0 %v829, 8
        %v1239 = vpop.permute.xlu0 %1238
        %1248 = vrot.lane.b32.xlu0 %v977, 16
        %v1249 = vpop.permute.xlu0 %1248
        %1250 = vrot.lane.b32.xlu0 %v980, 16
        %v1251 = vpop.permute.xlu0 %1250
        %1252 = vrot.lane.b32.xlu0 %v1024, 16
        %v1253 = vpop.permute.xlu0 %1252
        %1254 = vrot.lane.b32.xlu0 %v1027, 16
        %v1255 = vpop.permute.xlu0 %1254
        %1264 = vrot.lane.b32.xlu0 %v1175, 24
        %v1265 = vpop.permute.xlu0 %1264
        %1266 = vrot.lane.b32.xlu0 %v1178, 24
        %v1267 = vpop.permute.xlu0 %1266
        %1268 = vrot.lane.b32.xlu0 %v1222, 24
        %v1269 = vpop.permute.xlu0 %1268
        %1270 = vrot.lane.b32.xlu0 %v1225, 24
        %v1271 = vpop.permute.xlu0 %1270
        %v1276 = vsel %vm439, %v581, %v1233
        %v1277 = vsel %vm439, %v584, %v1235
        %v1278 = vsel %vm439, %v628, %v1237
        %v1279 = vsel %vm439, %v631, %v1239
        %v1280 = vsel %vm542, %v1276, %v1249
        %v1281 = vsel %vm542, %v1277, %v1251
        %v1282 = vsel %vm542, %v1278, %v1253
        %v1283 = vsel %vm542, %v1279, %v1255
        %vm1284 = vcmask 195584
        %v1285 = vsel %vm1284, %v1280, %v1265
        %v1286 = vsel %vm1284, %v1281, %v1267
        %v1287 = vsel %vm1284, %v1282, %v1269
        %v1288 = vsel %vm1284, %v1283, %v1271
        %v1289 = vmul.f32 %v1285, 0.125
        %v1290 = vmul.f32 %v1286, 0.125
        %v1291 = vmul.f32 %v1287, 0.125
        %v1292 = vmul.f32 %v1288, 0.125
        %v1293 = vmul.f32 %v1289, 0.5
        %v1294 = vmul.f32 %v1290, 0.5
        %v1295 = vadd.f32 %v1293, 0.0
        %v1296 = vadd.f32 %v1294, 0.0
        %vm1297 = vcmp.ge.f32.partialorder %v1295, 0.5
        %vm1298 = vcmp.ge.f32.partialorder %v1296, 0.5
        %v1299 = vsel %vm1297, 1, 0
        %v1300 = vsel %vm1298, 1, 0
        %v1301 = vcvt.s32.f32 %v1299
        %v1302 = vcvt.s32.f32 %v1300
        %v1303 = vpack.c.bf16 %v1302, %v1301
        %v1304 = vsel %vm1297, 0.0, %v1295
        %v1305 = vsel %vm1298, 0.0, %v1296
        %v1306 = vsub.f32 %v1291, %v1304
        %v1307 = vsub.f32 %v1292, %v1305
        %v1308 = vmul.f32 %v1306, 0.5
        %v1309 = vmul.f32 %v1307, 0.5
        %v1310 = vadd.f32 %v1304, %v1308
        %v1311 = vadd.f32 %v1305, %v1309
        %vm1312 = vcmp.ge.f32.partialorder %v1310, 0.5
        %vm1313 = vcmp.ge.f32.partialorder %v1311, 0.5
        %v1314 = vsel %vm1312, 1, 0
        %v1315 = vsel %vm1313, 1, 0
        %v1316 = vcvt.s32.f32 %v1314
        %v1317 = vcvt.s32.f32 %v1315
        %v1318 = vpack.c.bf16 %v1317, %v1316
        %v1319 = vld [vmem:[#allocation7] sm:$0xf]
        %v1320 = vld [vmem:[#allocation7 + $0x4] sm:$0xf]
        %v1321 = vld [vmem:[#allocation7 + $0x8] sm:$0xf]
        %v1322 = vld [vmem:[#allocation7 + $0xc] sm:$0xf]
        %v1323 = vld [vmem:[%s4] sm:$0x1]
        %v1325 = vlaneseq
        %v1326 = vshrl.u32 %v1325, 7
        %v1327 = vsub.s32 0, %v1326
        %v1328 = vrot.slane %v1323, %v1327
        %v1334 = vunpack.c.l.b16 %v1319
        %v1335 = vunpack.c.l.b16 %v1320
        %v1336 = vunpack.c.l.b16 %v1321
        %v1337 = vunpack.c.l.b16 %v1322
        %v1338 = vpack.c.b16 %v1335, %v1334
        %v1339 = vpack.c.b16 %v1337, %v1336
        %v1343 = vsel %vm354, %v1303, 0
        %v1346 = vsel %vm354, %v1318, 0
        %1348 = vmatprep.subr.bf16.mxu0 0
        %1349 = vmatpush1.bf16.msra.mxu0 %v1338
        %1350 = vmatprep.subr.bf16.mxu0 0
        %1351 = vmatpush1.bf16.msra.mxu0 %v1339
        %1352 = vmatprep.subr.bf16.mxu0 0
        %1353 = vmatpush1.bf16.msra.mxu0 0
        %1354 = vmatprep.subr.bf16.mxu0 0
        %1355 = vmatpush1.bf16.msra.mxu0 0
        %1356 = vmatprep.subr.bf16.mxu0 0
        %1357 = vmatpush1.bf16.msra.mxu0 0
        %1358 = vmatprep.subr.bf16.mxu0 0
        %1359 = vmatpush1.bf16.msra.mxu0 0
        %1360 = vmatprep.subr.bf16.mxu0 0
        %1361 = vmatpush1.bf16.msra.mxu0 0
        %1362 = vmatprep.subr.bf16.mxu0 0
        %1363 = vmatpush1.bf16.msra.mxu0 0
        %1364 = vmatprep.subr.bf16.mxu0 0
        %1365 = vmatpush1.bf16.msra.mxu0 0
        %1366 = vmatprep.subr.bf16.mxu0 0
        %1367 = vmatpush1.bf16.msra.mxu0 0
        %1368 = vmatprep.subr.bf16.mxu0 0
        %1369 = vmatpush1.bf16.msra.mxu0 0
        %1370 = vmatprep.subr.bf16.mxu0 0
        %1371 = vmatpush1.bf16.msra.mxu0 0
        %1372 = vmatprep.subr.bf16.mxu0 0
        %1373 = vmatpush1.bf16.msra.mxu0 0
        %1374 = vmatprep.subr.bf16.mxu0 0
        %1375 = vmatpush1.bf16.msra.mxu0 0
        %1376 = vmatprep.subr.bf16.mxu0 0
        %1377 = vmatpush1.bf16.msra.mxu0 0
        %1378 = vmatprep.subr.bf16.mxu0 0
        %1379 = vmatpush1.bf16.msra.mxu0 0
        %1380 = vmatprep.mubr.bf16.mxu0 0
        %1381 = vmatmul.mubr.bf16.gmra.mrb[0].mxu0 %v1343
        %v1382 = vpop.f32.mrb[0].mxu0
        %v1383 = vadd.f32 %v1328, %v1382
        %v1384 = vpop.f32.mrb[0].mxu0
        %v1385 = vpop.f32.mrb[0].mxu0
        %v1386 = vadd.f32 %v1328, %v1385
        %v1387 = vpop.f32.mrb[0].mxu0
        %1388 = vmatprep.mubr.bf16.mxu0 0
        %1389 = vmatmul.mubr.bf16.gmra.mrb[0].mxu0 %v1346
        %v1390 = vpop.f32.mrb[0].mxu0
        %v1391 = vadd.f32 %v1328, %v1390
        %v1392 = vpop.f32.mrb[0].mxu0
        %v1393 = vpop.f32.mrb[0].mxu0
        %v1394 = vadd.f32 %v1328, %v1393
        %v1395 = vpop.f32.mrb[0].mxu0
        %1396 = vdwg.mxu0
        %v1397 = vld [vmem:[%s262] sm:$0xff]
        %v1398 = vld [vmem:[%s262 + $0x8] sm:$0xff]
        %v1399 = vadd.f32 %v1397, %v1383
        %v1400 = vadd.f32 %v1398, %v1386
        %1401 = vst.msk [vmem:[%s296] sm:$0xff] %vm354, %v1399
        %1402 = vst.msk [vmem:[%s296 + $0x8] sm:$0xff] %vm354, %v1400
        %v1403 = vld [vmem:[%s302] sm:$0xff]
        %v1404 = vld [vmem:[%s302 + $0x8] sm:$0xff]
        %v1405 = vadd.f32 %v1403, %v1391
        %v1406 = vadd.f32 %v1404, %v1394
        %s1407 = scalar_lea.vmem %s296, 16 [#allocation8]
        %1408 = vst.msk [vmem:[%s1407] sm:$0xff] %vm354, %v1405
        %1409 = vst.msk [vmem:[%s1407 + $0x8] sm:$0xff] %vm354, %v1406
        %s1410 = sand.u32 %s141, 1
        %s1411 = scalar_lea.sflag [#allocation4], %s1410
        %s1412 = sand.u32 %s141, 1
        %s1413 = smul.addr %s1412, 32
        %s1414 = scalar_lea.vmem [#allocation8], %s1413
        // Predicated region
        $region53: #{tpu_custom_call.1} parent=39 // pred_check
          %p1415 = pneg %p151
        $region54: #{tpu_custom_call.1} parent=39 // pred_check_branch
          %1417 = sbr.rel (%p1415) target = $region56
        $region55: #{tpu_custom_call.1} parent=39 // pred_region
          #allocation12 [shape = 'u32[6]{0}', space=smem, size = 0x18, scoped, tag = 'DMA stride descriptor']
          %s1418 = smul.u32 2, %s23
          %s1420 = ssub.s32 512, 512
          %1421 = vsyncadd %s1411, %s1420
          %s1422 = smul.addr %s1418, 128
          %s1423 = scalar_lea.hbm %s5, %s1422
          %s1425 = sshll.u32 1, 14
          %s1426 = sxor.u32 4294967295, %s1425
          %s1429 = sshll.u32 7, 18
          %s1430 = sxor.u32 4294967295, %s1429
          %s1431 = sand.u32 0, %s1430
          %s1433 = sor.u32 %s1431, 0
          %s1435 = sshll.u32 3, 24
          %s1436 = sxor.u32 4294967295, %s1435
          %s1437 = sand.u32 %s1433, %s1436
          %s1439 = sor.u32 %s1437, 0
          %s1440 = sshll.u32 %s1414, 4
          %s1441 = int_to_ptr.vmem [resolvable:$true] %s1440
          %1447 = sst [smem:[#allocation12]] 256
          %s1448 = scalar_lea.smem [#allocation12], 1
          %1449 = sst [smem:[%s1448]] 512
          %s1450 = scalar_lea.smem [#allocation12], 2
          %1451 = sst [smem:[%s1450]] 2
          %s1452 = scalar_lea.smem [#allocation12], 3
          %1453 = sst [smem:[%s1452]] 128
          %s1454 = scalar_lea.smem [#allocation12], 4
          %1455 = sst [smem:[%s1454]] 128
          %s1456 = scalar_lea.smem [#allocation12], 5
          %1457 = sst [smem:[%s1456]] 8
          %1459 = dma.general %s1441, 512, %s1423, %s1411, [#allocation11], [#allocation12], %s1439, 0
        $region56: #{tpu_custom_call.1} parent=39 // pred_fallthru
          _
      $region40: #{tpu_custom_call.1} parent=5 // pred_fallthru
        _
      %p1460 = scmp.le.s32.totalorder 2, %s18
      // Predicated region
      $region57: #{tpu_custom_call.1} parent=5 // pred_check
        %p1461 = pneg %p1460
      $region58: #{tpu_custom_call.1} parent=5 // pred_check_branch
        %1463 = sbr.rel (%p1461) target = $region60
      $region59: #{tpu_custom_call.1} parent=5 // pred_region
        %s1464 = ssub.s32 %s18, 2
        // Predicated region
        $region61: #{tpu_custom_call.1} parent=59 // pred_check
          %p1465 = pneg %p157
        $region62: #{tpu_custom_call.1} parent=59 // pred_check_branch
          %1467 = sbr.rel (%p1465) target = $region64
        $region63: #{tpu_custom_call.1} parent=59 // pred_region
          %s1468 = sand.u32 %s142, 1
          %s1469 = scalar_lea.sflag [#allocation4], %s1468
          %s1470 = sand.u32 %s142, 1
          %s1471 = smul.addr %s1470, 32
          %s1472 = scalar_lea.vmem [#allocation8], %s1471
          %1473 = dma.done %s1469, 512
        $region64: #{tpu_custom_call.1} parent=59 // pred_fallthru
          _
      $region60: #{tpu_custom_call.1} parent=5 // pred_fallthru
        _
    $region6: #{tpu_custom_call.1} parent=1 // loop_footer
      %s22 = sadd.s32 1, %s18
    $region7: #{tpu_custom_call.1} parent=1 // loop_footer_branch
      %17 = sbr.rel target = $region3
    $region8: #{tpu_custom_call.1} parent=1 // loop_exit
      _
    %1474 = vsyncpa [#allocation3], 1
    %s1475 = scalar_lea.sflag [#allocation3], 1
    %1476 = vsyncpa %s1475, 1
    %1477 = vsyncpa [#allocation6], 1
    %1478 = vsyncpa [#allocation4], 1
    %s1479 = scalar_lea.sflag [#allocation4], 1
    %1480 = vsyncpa %s1479, 1

</llo_original>
